<compile_context>
chip_gen: v7x
topology: tpu7x:2x2x1
jax: 0.10.0
libtpu: 0.0.40
codegen_flags: <defaults>
</compile_context>

<pallas_src>
import jax
import jax.numpy as jnp
from jax.experimental import pallas as pl
from jax.experimental.pallas import tpu as pltpu

HIDDEN = 512
NUM_CLASSES = 10
OUT_PAD = 128      # lane-dense padded output width (multiple of 128)
TN = 128           # batch rows per grid step (keeps the MXU fed)


def label_predictor_kernel(x_ref, w12_ref, b12_ref, w3_ref, b3_ref, out_ref):
    # Layer 1: Linear(512,512) + ReLU  (bf16 MXU matmul, f32 accumulate)
    h = jnp.dot(x_ref[...], w12_ref[0], preferred_element_type=jnp.float32)
    h = jnp.maximum(h + b12_ref[0], 0.0).astype(jnp.bfloat16)
    # Layer 2: Linear(512,512) + ReLU
    h = jnp.dot(h, w12_ref[1], preferred_element_type=jnp.float32)
    h = jnp.maximum(h + b12_ref[1], 0.0).astype(jnp.bfloat16)
    # Layer 3: Linear(512,10), zero-padded to 128 output lanes (lane-dense store)
    out_ref[...] = (jnp.dot(h, w3_ref[...], preferred_element_type=jnp.float32)
                    + b3_ref[...]).astype(out_ref.dtype)


def init_params(key):
    """Deterministic synthetic parameters, PyTorch-shaped (out, in)."""
    keys = jax.random.split(key, 6)
    bound = 1.0 / (HIDDEN ** 0.5)
    w1 = jax.random.uniform(keys[0], (HIDDEN, HIDDEN), jnp.float32, -bound, bound)
    b1 = jax.random.uniform(keys[1], (HIDDEN,), jnp.float32, -bound, bound)
    w2 = jax.random.uniform(keys[2], (HIDDEN, HIDDEN), jnp.float32, -bound, bound)
    b2 = jax.random.uniform(keys[3], (HIDDEN,), jnp.float32, -bound, bound)
    w3 = jax.random.uniform(keys[4], (NUM_CLASSES, HIDDEN), jnp.float32, -bound, bound)
    b3 = jax.random.uniform(keys[5], (NUM_CLASSES,), jnp.float32, -bound, bound)
    return (w1, b1), (w2, b2), (w3, b3)


def label_predictor_forward(h, params):
    (w1, b1), (w2, b2), (w3, b3) = params
    N = h.shape[0]
    n_pad = max(TN, ((N + TN - 1) // TN) * TN)

    # Pad batch to a multiple of TN and cast activations to bf16 (halves DMA bytes).
    x = jnp.pad(h, ((0, n_pad - N), (0, 0))).astype(jnp.bfloat16)

    # Pre-transpose weights to (in, out); stack hidden-layer params; cast to bf16.
    w12 = jnp.stack([w1.T, w2.T]).astype(jnp.bfloat16)            # (2, 512, 512)
    b12 = jnp.stack([b1, b2]).reshape(2, 1, HIDDEN)               # (2, 1, 512) f32
    w3p = (jnp.zeros((HIDDEN, OUT_PAD), jnp.float32)
           .at[:, :NUM_CLASSES].set(w3.T)).astype(jnp.bfloat16)   # (512, 128)
    b3p = jnp.zeros((1, OUT_PAD), jnp.float32).at[0, :NUM_CLASSES].set(b3)

    out = pl.pallas_call(
        label_predictor_kernel,
        out_shape=jax.ShapeDtypeStruct((n_pad, OUT_PAD), jnp.float32),
        grid=(n_pad // TN,),
        in_specs=[
            pl.BlockSpec((TN, HIDDEN), lambda i: (i, 0)),             # x tile
            pl.BlockSpec((2, HIDDEN, HIDDEN), lambda i: (0, 0, 0)),   # W1,W2 (resident)
            pl.BlockSpec((2, 1, HIDDEN), lambda i: (0, 0, 0)),        # b1,b2
            pl.BlockSpec((HIDDEN, OUT_PAD), lambda i: (0, 0)),        # W3 (padded)
            pl.BlockSpec((1, OUT_PAD), lambda i: (0, 0)),             # b3 (padded)
        ],
        out_specs=pl.BlockSpec((TN, OUT_PAD), lambda i: (i, 0)),
        compiler_params=pltpu.CompilerParams(
            dimension_semantics=("parallel",),
            # Real footprint: ~1.1 MiB bf16 weights + double-buffered 128-row tiles
            # (~0.4 MiB); 16 MiB leaves plenty of headroom even on v7x (64 MiB VMEM).
            vmem_limit_bytes=16 << 20,
        ),
    )(x, w12, b12, w3p, b3p)

    return out[:N, :NUM_CLASSES]


if __name__ == "__main__":
    key = jax.random.PRNGKey(0)
    k_x, k_p = jax.random.split(key)

    # Small batch; feature dim is fixed to 512 by the module definition.
    N = 8
    x = jax.random.normal(k_x, (N, HIDDEN), jnp.float32)
    params = init_params(k_p)

    fwd = jax.jit(label_predictor_forward)
    y = jax.block_until_ready(fwd(x, params))
    assert y.shape == (N, NUM_CLASSES)

    # Pure-JAX f32 reference; loose tolerance accounts for bf16 matmul inputs.
    (w1, b1), (w2, b2), (w3, b3) = params
    ref = jnp.maximum(x @ w1.T + b1, 0.0)
    ref = jnp.maximum(ref @ w2.T + b2, 0.0)
    ref = ref @ w3.T + b3
    assert jnp.max(jnp.abs(y - ref)) < 1e-1

    print("KERNEL_OK")
</pallas_src>

<mosaic_0001>
module attributes {stable_mosaic.version = 11 : i64} {
  func.func @label_predictor_kernel(%arg0: i32, %arg1: memref<128x512xbf16, #tpu.memory_space<vmem>>, %arg2: memref<2x512x512xbf16, #tpu.memory_space<vmem>>, %arg3: memref<2x1x512xf32, #tpu.memory_space<vmem>>, %arg4: memref<512x128xbf16, #tpu.memory_space<vmem>>, %arg5: memref<1x128xf32, #tpu.memory_space<vmem>>, %arg6: memref<128x128xf32, #tpu.memory_space<vmem>>) attributes {dimension_semantics = [#tpu.dimension_semantics<parallel>], iteration_bounds = array<i64: 1>, scalar_prefetch = 0 : i64, scratch_operands = 0 : i64, tpu.core_type = #tpu.core_type<tc>, window_params = [{transform_indices = @transform_0, window_bounds = array<i64: 128, 512>}, {pipeline_mode = #tpu.pipeline_mode<synchronous>, transform_indices = @transform_1, window_bounds = array<i64: 2, 512, 512>}, {pipeline_mode = #tpu.pipeline_mode<synchronous>, transform_indices = @transform_2, window_bounds = array<i64: 2, 1, 512>}, {pipeline_mode = #tpu.pipeline_mode<synchronous>, transform_indices = @transform_3, window_bounds = array<i64: 512, 128>}, {pipeline_mode = #tpu.pipeline_mode<synchronous>, transform_indices = @transform_4, window_bounds = array<i64: 1, 128>}, {transform_indices = @transform_5, window_bounds = array<i64: 128, 128>}]} {
    %c0 = arith.constant 0 : index
    %c0_0 = arith.constant 0 : index
    %0 = vector.load %arg1[%c0, %c0_0] : memref<128x512xbf16, #tpu.memory_space<vmem>>, vector<128x512xbf16>
    %c0_1 = arith.constant 0 : index
    %c0_2 = arith.constant 0 : index
    %c0_3 = arith.constant 0 : index
    %1 = vector.load %arg2[%c0_1, %c0_2, %c0_3] : memref<2x512x512xbf16, #tpu.memory_space<vmem>>, vector<1x512x512xbf16>
    %2 = vector.shape_cast %1 : vector<1x512x512xbf16> to vector<512x512xbf16>
    %cst = arith.constant dense<0.000000e+00> : vector<128x512xf32>
    %3 = tpu.matmul %0, %2, %cst {dimension_numbers = #tpu.dot_dimension_numbers<[1], [0], [0], [1], [0, 0, 1, 1], [], []>} : vector<128x512xbf16>, vector<512x512xbf16>, vector<128x512xf32> -> vector<128x512xf32>
    %c0_4 = arith.constant 0 : index
    %c0_5 = arith.constant 0 : index
    %c0_6 = arith.constant 0 : index
    %4 = vector.load %arg3[%c0_4, %c0_5, %c0_6] : memref<2x1x512xf32, #tpu.memory_space<vmem>>, vector<1x1x512xf32>
    %5 = vector.shape_cast %4 : vector<1x1x512xf32> to vector<1x512xf32>
    %6 = vector.broadcast %5 : vector<1x512xf32> to vector<128x512xf32>
    %7 = arith.addf %3, %6 : vector<128x512xf32>
    %cst_7 = arith.constant 0.000000e+00 : f32
    %8 = vector.broadcast %cst_7 : f32 to vector<128x512xf32>
    %9 = arith.maximumf %7, %8 : vector<128x512xf32>
    %10 = arith.truncf %9 : vector<128x512xf32> to vector<128x512xbf16>
    %c1 = arith.constant 1 : index
    %c0_8 = arith.constant 0 : index
    %c0_9 = arith.constant 0 : index
    %11 = vector.load %arg2[%c1, %c0_8, %c0_9] : memref<2x512x512xbf16, #tpu.memory_space<vmem>>, vector<1x512x512xbf16>
    %12 = vector.shape_cast %11 : vector<1x512x512xbf16> to vector<512x512xbf16>
    %cst_10 = arith.constant dense<0.000000e+00> : vector<128x512xf32>
    %13 = tpu.matmul %10, %12, %cst_10 {dimension_numbers = #tpu.dot_dimension_numbers<[1], [0], [0], [1], [0, 0, 1, 1], [], []>} : vector<128x512xbf16>, vector<512x512xbf16>, vector<128x512xf32> -> vector<128x512xf32>
    %c1_11 = arith.constant 1 : index
    %c0_12 = arith.constant 0 : index
    %c0_13 = arith.constant 0 : index
    %14 = vector.load %arg3[%c1_11, %c0_12, %c0_13] : memref<2x1x512xf32, #tpu.memory_space<vmem>>, vector<1x1x512xf32>
    %15 = vector.shape_cast %14 : vector<1x1x512xf32> to vector<1x512xf32>
    %16 = vector.broadcast %15 : vector<1x512xf32> to vector<128x512xf32>
    %17 = arith.addf %13, %16 : vector<128x512xf32>
    %cst_14 = arith.constant 0.000000e+00 : f32
    %18 = vector.broadcast %cst_14 : f32 to vector<128x512xf32>
    %19 = arith.maximumf %17, %18 : vector<128x512xf32>
    %20 = arith.truncf %19 : vector<128x512xf32> to vector<128x512xbf16>
    %c0_15 = arith.constant 0 : index
    %c0_16 = arith.constant 0 : index
    %21 = vector.load %arg4[%c0_15, %c0_16] : memref<512x128xbf16, #tpu.memory_space<vmem>>, vector<512x128xbf16>
    %cst_17 = arith.constant dense<0.000000e+00> : vector<128x128xf32>
    %22 = tpu.matmul %20, %21, %cst_17 {dimension_numbers = #tpu.dot_dimension_numbers<[1], [0], [0], [1], [0, 0, 1, 1], [], []>} : vector<128x512xbf16>, vector<512x128xbf16>, vector<128x128xf32> -> vector<128x128xf32>
    %c0_18 = arith.constant 0 : index
    %c0_19 = arith.constant 0 : index
    %23 = vector.load %arg5[%c0_18, %c0_19] : memref<1x128xf32, #tpu.memory_space<vmem>>, vector<1x128xf32>
    %24 = vector.broadcast %23 : vector<1x128xf32> to vector<128x128xf32>
    %25 = arith.addf %22, %24 : vector<128x128xf32>
    %c0_20 = arith.constant 0 : index
    %c0_21 = arith.constant 0 : index
    %26 = vector.load %arg6[%c0_20, %c0_21] : memref<128x128xf32, #tpu.memory_space<vmem>>, vector<128x128xf32>
    tpu.vector_store %arg6[%c0_20, %c0_21], %25 {strides = array<i32>} : memref<128x128xf32, #tpu.memory_space<vmem>>, vector<128x128xf32>,
    return
  }
  func.func @transform_0(%arg0: i32) -> (i32, i32) {
    %c0_i32 = arith.constant 0 : i32
    %c0_i32_0 = arith.constant 0 : i32
    return %arg0, %c0_i32 : i32, i32
  }
  func.func @transform_1(%arg0: i32) -> (i32, i32, i32) {
    %c0_i32 = arith.constant 0 : i32
    %c0_i32_0 = arith.constant 0 : i32
    %c0_i32_1 = arith.constant 0 : i32
    %c0_i32_2 = arith.constant 0 : i32
    return %c0_i32, %c0_i32_0, %c0_i32_1 : i32, i32, i32
  }
  func.func @transform_2(%arg0: i32) -> (i32, i32, i32) {
    %c0_i32 = arith.constant 0 : i32
    %c0_i32_0 = arith.constant 0 : i32
    %c0_i32_1 = arith.constant 0 : i32
    %c0_i32_2 = arith.constant 0 : i32
    return %c0_i32, %c0_i32_0, %c0_i32_1 : i32, i32, i32
  }
  func.func @transform_3(%arg0: i32) -> (i32, i32) {
    %c0_i32 = arith.constant 0 : i32
    %c0_i32_0 = arith.constant 0 : i32
    %c0_i32_1 = arith.constant 0 : i32
    return %c0_i32, %c0_i32_0 : i32, i32
  }
  func.func @transform_4(%arg0: i32) -> (i32, i32) {
    %c0_i32 = arith.constant 0 : i32
    %c0_i32_0 = arith.constant 0 : i32
    %c0_i32_1 = arith.constant 0 : i32
    return %c0_i32, %c0_i32_0 : i32, i32
  }
  func.func @transform_5(%arg0: i32) -> (i32, i32) {
    %c0_i32 = arith.constant 0 : i32
    %c0_i32_0 = arith.constant 0 : i32
    return %arg0, %c0_i32 : i32, i32
  }
}

</mosaic_0001>

<llo_original>
// kernel: label_predictor_forward.1
$region0: #{label_predictor_forward.1}
  #allocation0 [shape = 'u32[]', space=smem, size = 0x4, offset = 0x4, fixed_abs, tag = 'smem constant byte address 0x4 - core index']
  #allocation1 [shape = 'u32[144,128]{1,0:T(1,128)}', space=vmem, size = 0x12000, scoped, tag = 'internal scratch']
  %s0 = inlined_call_operand.vmem [shape: bf16[128,512], index: 0, kind: input, shape index: {}]
  %s1 = inlined_call_operand.vmem [shape: bf16[2,512,512], index: 1, kind: input, shape index: {}]
  %s2 = inlined_call_operand.vmem [shape: f32[2,1,512], index: 2, kind: input, shape index: {}]
  %s3 = inlined_call_operand.vmem [shape: bf16[512,128], index: 3, kind: input, shape index: {}]
  %s4 = inlined_call_operand.vmem [shape: f32[1,128], index: 4, kind: input, shape index: {}]
  %s5 = inlined_call_operand.vmem [shape: f32[128,128], index: 5, kind: output, shape index: {}]
  %s6 = sld [smem:[#allocation0]]
  $region30: #{label_predictor_forward.1} parent=0
    _
  %s8 = ssub.s32 1, %s6
  %s9 = scalar_select 0, %s8, %s6
  // Predicated region
  $region2: #{label_predictor_forward.1} parent=0 // pred_check
    _
  $region3: #{label_predictor_forward.1} parent=0 // pred_check_branch
    %11 = sbr.rel (0) target = $region5
  $region4: #{label_predictor_forward.1} parent=0 // pred_region
    _
  $region5: #{label_predictor_forward.1} parent=0 // pred_fallthru
    _
  // Predicated region
  $region6: #{label_predictor_forward.1} parent=0 // pred_check
    _
  $region7: #{label_predictor_forward.1} parent=0 // pred_check_branch
    %13 = sbr.rel (0) target = $region9
  $region8: #{label_predictor_forward.1} parent=0 // pred_region
    _
  $region9: #{label_predictor_forward.1} parent=0 // pred_fallthru
    _
  // Predicated region
  $region10: #{label_predictor_forward.1} parent=0 // pred_check
    _
  $region11: #{label_predictor_forward.1} parent=0 // pred_check_branch
    %15 = sbr.rel (0) target = $region13
  $region12: #{label_predictor_forward.1} parent=0 // pred_region
    _
  $region13: #{label_predictor_forward.1} parent=0 // pred_fallthru
    _
  // Predicated region
  $region14: #{label_predictor_forward.1} parent=0 // pred_check
    _
  $region15: #{label_predictor_forward.1} parent=0 // pred_check_branch
    %17 = sbr.rel (0) target = $region17
  $region16: #{label_predictor_forward.1} parent=0 // pred_region
    _
  $region17: #{label_predictor_forward.1} parent=0 // pred_fallthru
    _
  // Predicated region
  $region18: #{label_predictor_forward.1} parent=0 // pred_check
    _
  $region19: #{label_predictor_forward.1} parent=0 // pred_check_branch
    %19 = sbr.rel (0) target = $region21
  $region20: #{label_predictor_forward.1} parent=0 // pred_region
    _
  $region21: #{label_predictor_forward.1} parent=0 // pred_fallthru
    _
  %v21 = vld [vmem:[%s0] sm:$0xff]
  %v22 = vld [vmem:[%s0 + $0x8] sm:$0xff]
  %v23 = vld [vmem:[%s0 + $0x10] sm:$0xff]
  %v24 = vld [vmem:[%s0 + $0x18] sm:$0xff]
  %v25 = vld [vmem:[%s0 + $0x20] sm:$0xff]
  %v26 = vld [vmem:[%s0 + $0x28] sm:$0xff]
  %v27 = vld [vmem:[%s0 + $0x30] sm:$0xff]
  %v28 = vld [vmem:[%s0 + $0x38] sm:$0xff]
  %v29 = vld [vmem:[%s0 + $0x40] sm:$0xff]
  %v30 = vld [vmem:[%s0 + $0x48] sm:$0xff]
  %v31 = vld [vmem:[%s0 + $0x50] sm:$0xff]
  %v32 = vld [vmem:[%s0 + $0x58] sm:$0xff]
  %v33 = vld [vmem:[%s0 + $0x60] sm:$0xff]
  %v34 = vld [vmem:[%s0 + $0x68] sm:$0xff]
  %v35 = vld [vmem:[%s0 + $0x70] sm:$0xff]
  %v36 = vld [vmem:[%s0 + $0x78] sm:$0xff]
  %v37 = vld [vmem:[%s0 + $0x80] sm:$0xff]
  %v38 = vld [vmem:[%s0 + $0x88] sm:$0xff]
  %v39 = vld [vmem:[%s0 + $0x90] sm:$0xff]
  %v40 = vld [vmem:[%s0 + $0x98] sm:$0xff]
  %v41 = vld [vmem:[%s0 + $0xa0] sm:$0xff]
  %v42 = vld [vmem:[%s0 + $0xa8] sm:$0xff]
  %v43 = vld [vmem:[%s0 + $0xb0] sm:$0xff]
  %v44 = vld [vmem:[%s0 + $0xb8] sm:$0xff]
  %v45 = vld [vmem:[%s0 + $0xc0] sm:$0xff]
  %v46 = vld [vmem:[%s0 + $0xc8] sm:$0xff]
  %v47 = vld [vmem:[%s0 + $0xd0] sm:$0xff]
  %v48 = vld [vmem:[%s0 + $0xd8] sm:$0xff]
  %v49 = vld [vmem:[%s0 + $0xe0] sm:$0xff]
  %v50 = vld [vmem:[%s0 + $0xe8] sm:$0xff]
  %v51 = vld [vmem:[%s0 + $0xf0] sm:$0xff]
  %v52 = vld [vmem:[%s0 + $0xf8] sm:$0xff]
  %v53 = vld [vmem:[%s1] sm:$0xff]
  %v54 = vld [vmem:[%s1 + $0x8] sm:$0xff]
  %v55 = vld [vmem:[%s1 + $0x10] sm:$0xff]
  %v56 = vld [vmem:[%s1 + $0x18] sm:$0xff]
  %v57 = vld [vmem:[%s1 + $0x20] sm:$0xff]
  %v58 = vld [vmem:[%s1 + $0x28] sm:$0xff]
  %v59 = vld [vmem:[%s1 + $0x30] sm:$0xff]
  %v60 = vld [vmem:[%s1 + $0x38] sm:$0xff]
  %v61 = vld [vmem:[%s1 + $0x40] sm:$0xff]
  %v62 = vld [vmem:[%s1 + $0x48] sm:$0xff]
  %v63 = vld [vmem:[%s1 + $0x50] sm:$0xff]
  %v64 = vld [vmem:[%s1 + $0x58] sm:$0xff]
  %v65 = vld [vmem:[%s1 + $0x60] sm:$0xff]
  %v66 = vld [vmem:[%s1 + $0x68] sm:$0xff]
  %v67 = vld [vmem:[%s1 + $0x70] sm:$0xff]
  %v68 = vld [vmem:[%s1 + $0x78] sm:$0xff]
  %v69 = vld [vmem:[%s1 + $0x80] sm:$0xff]
  %v70 = vld [vmem:[%s1 + $0x88] sm:$0xff]
  %v71 = vld [vmem:[%s1 + $0x90] sm:$0xff]
  %v72 = vld [vmem:[%s1 + $0x98] sm:$0xff]
  %v73 = vld [vmem:[%s1 + $0xa0] sm:$0xff]
  %v74 = vld [vmem:[%s1 + $0xa8] sm:$0xff]
  %v75 = vld [vmem:[%s1 + $0xb0] sm:$0xff]
  %v76 = vld [vmem:[%s1 + $0xb8] sm:$0xff]
  %v77 = vld [vmem:[%s1 + $0xc0] sm:$0xff]
  %v78 = vld [vmem:[%s1 + $0xc8] sm:$0xff]
  %v79 = vld [vmem:[%s1 + $0xd0] sm:$0xff]
  %v80 = vld [vmem:[%s1 + $0xd8] sm:$0xff]
  %v81 = vld [vmem:[%s1 + $0xe0] sm:$0xff]
  %v82 = vld [vmem:[%s1 + $0xe8] sm:$0xff]
  %v83 = vld [vmem:[%s1 + $0xf0] sm:$0xff]
  %v84 = vld [vmem:[%s1 + $0xf8] sm:$0xff]
  %v85 = vld [vmem:[%s1 + $0x100] sm:$0xff]
  %v86 = vld [vmem:[%s1 + $0x108] sm:$0xff]
  %v87 = vld [vmem:[%s1 + $0x110] sm:$0xff]
  %v88 = vld [vmem:[%s1 + $0x118] sm:$0xff]
  %v89 = vld [vmem:[%s1 + $0x120] sm:$0xff]
  %v90 = vld [vmem:[%s1 + $0x128] sm:$0xff]
  %v91 = vld [vmem:[%s1 + $0x130] sm:$0xff]
  %v92 = vld [vmem:[%s1 + $0x138] sm:$0xff]
  %v93 = vld [vmem:[%s1 + $0x140] sm:$0xff]
  %v94 = vld [vmem:[%s1 + $0x148] sm:$0xff]
  %v95 = vld [vmem:[%s1 + $0x150] sm:$0xff]
  %v96 = vld [vmem:[%s1 + $0x158] sm:$0xff]
  %v97 = vld [vmem:[%s1 + $0x160] sm:$0xff]
  %v98 = vld [vmem:[%s1 + $0x168] sm:$0xff]
  %v99 = vld [vmem:[%s1 + $0x170] sm:$0xff]
  %v100 = vld [vmem:[%s1 + $0x178] sm:$0xff]
  %v101 = vld [vmem:[%s1 + $0x180] sm:$0xff]
  %v102 = vld [vmem:[%s1 + $0x188] sm:$0xff]
  %v103 = vld [vmem:[%s1 + $0x190] sm:$0xff]
  %v104 = vld [vmem:[%s1 + $0x198] sm:$0xff]
  %v105 = vld [vmem:[%s1 + $0x1a0] sm:$0xff]
  %v106 = vld [vmem:[%s1 + $0x1a8] sm:$0xff]
  %v107 = vld [vmem:[%s1 + $0x1b0] sm:$0xff]
  %v108 = vld [vmem:[%s1 + $0x1b8] sm:$0xff]
  %v109 = vld [vmem:[%s1 + $0x1c0] sm:$0xff]
  %v110 = vld [vmem:[%s1 + $0x1c8] sm:$0xff]
  %v111 = vld [vmem:[%s1 + $0x1d0] sm:$0xff]
  %v112 = vld [vmem:[%s1 + $0x1d8] sm:$0xff]
  %v113 = vld [vmem:[%s1 + $0x1e0] sm:$0xff]
  %v114 = vld [vmem:[%s1 + $0x1e8] sm:$0xff]
  %v115 = vld [vmem:[%s1 + $0x1f0] sm:$0xff]
  %v116 = vld [vmem:[%s1 + $0x1f8] sm:$0xff]
  %v117 = vld [vmem:[%s1 + $0x200] sm:$0xff]
  %v118 = vld [vmem:[%s1 + $0x208] sm:$0xff]
  %v119 = vld [vmem:[%s1 + $0x210] sm:$0xff]
  %v120 = vld [vmem:[%s1 + $0x218] sm:$0xff]
  %v121 = vld [vmem:[%s1 + $0x220] sm:$0xff]
  %v122 = vld [vmem:[%s1 + $0x228] sm:$0xff]
  %v123 = vld [vmem:[%s1 + $0x230] sm:$0xff]
  %v124 = vld [vmem:[%s1 + $0x238] sm:$0xff]
  %v125 = vld [vmem:[%s1 + $0x240] sm:$0xff]
  %v126 = vld [vmem:[%s1 + $0x248] sm:$0xff]
  %v127 = vld [vmem:[%s1 + $0x250] sm:$0xff]
  %v128 = vld [vmem:[%s1 + $0x258] sm:$0xff]
  %v129 = vld [vmem:[%s1 + $0x260] sm:$0xff]
  %v130 = vld [vmem:[%s1 + $0x268] sm:$0xff]
  %v131 = vld [vmem:[%s1 + $0x270] sm:$0xff]
  %v132 = vld [vmem:[%s1 + $0x278] sm:$0xff]
  %v133 = vld [vmem:[%s1 + $0x280] sm:$0xff]
  %v134 = vld [vmem:[%s1 + $0x288] sm:$0xff]
  %v135 = vld [vmem:[%s1 + $0x290] sm:$0xff]
  %v136 = vld [vmem:[%s1 + $0x298] sm:$0xff]
  %v137 = vld [vmem:[%s1 + $0x2a0] sm:$0xff]
  %v138 = vld [vmem:[%s1 + $0x2a8] sm:$0xff]
  %v139 = vld [vmem:[%s1 + $0x2b0] sm:$0xff]
  %v140 = vld [vmem:[%s1 + $0x2b8] sm:$0xff]
  %v141 = vld [vmem:[%s1 + $0x2c0] sm:$0xff]
  %v142 = vld [vmem:[%s1 + $0x2c8] sm:$0xff]
  %v143 = vld [vmem:[%s1 + $0x2d0] sm:$0xff]
  %v144 = vld [vmem:[%s1 + $0x2d8] sm:$0xff]
  %v145 = vld [vmem:[%s1 + $0x2e0] sm:$0xff]
  %v146 = vld [vmem:[%s1 + $0x2e8] sm:$0xff]
  %v147 = vld [vmem:[%s1 + $0x2f0] sm:$0xff]
  %v148 = vld [vmem:[%s1 + $0x2f8] sm:$0xff]
  %v149 = vld [vmem:[%s1 + $0x300] sm:$0xff]
  %v150 = vld [vmem:[%s1 + $0x308] sm:$0xff]
  %v151 = vld [vmem:[%s1 + $0x310] sm:$0xff]
  %v152 = vld [vmem:[%s1 + $0x318] sm:$0xff]
  %v153 = vld [vmem:[%s1 + $0x320] sm:$0xff]
  %v154 = vld [vmem:[%s1 + $0x328] sm:$0xff]
  %v155 = vld [vmem:[%s1 + $0x330] sm:$0xff]
  %v156 = vld [vmem:[%s1 + $0x338] sm:$0xff]
  %v157 = vld [vmem:[%s1 + $0x340] sm:$0xff]
  %v158 = vld [vmem:[%s1 + $0x348] sm:$0xff]
  %v159 = vld [vmem:[%s1 + $0x350] sm:$0xff]
  %v160 = vld [vmem:[%s1 + $0x358] sm:$0xff]
  %v161 = vld [vmem:[%s1 + $0x360] sm:$0xff]
  %v162 = vld [vmem:[%s1 + $0x368] sm:$0xff]
  %v163 = vld [vmem:[%s1 + $0x370] sm:$0xff]
  %v164 = vld [vmem:[%s1 + $0x378] sm:$0xff]
  %v165 = vld [vmem:[%s1 + $0x380] sm:$0xff]
  %v166 = vld [vmem:[%s1 + $0x388] sm:$0xff]
  %v167 = vld [vmem:[%s1 + $0x390] sm:$0xff]
  %v168 = vld [vmem:[%s1 + $0x398] sm:$0xff]
  %v169 = vld [vmem:[%s1 + $0x3a0] sm:$0xff]
  %v170 = vld [vmem:[%s1 + $0x3a8] sm:$0xff]
  %v171 = vld [vmem:[%s1 + $0x3b0] sm:$0xff]
  %v172 = vld [vmem:[%s1 + $0x3b8] sm:$0xff]
  %v173 = vld [vmem:[%s1 + $0x3c0] sm:$0xff]
  %v174 = vld [vmem:[%s1 + $0x3c8] sm:$0xff]
  %v175 = vld [vmem:[%s1 + $0x3d0] sm:$0xff]
  %v176 = vld [vmem:[%s1 + $0x3d8] sm:$0xff]
  %v177 = vld [vmem:[%s1 + $0x3e0] sm:$0xff]
  %v178 = vld [vmem:[%s1 + $0x3e8] sm:$0xff]
  %v179 = vld [vmem:[%s1 + $0x3f0] sm:$0xff]
  %v180 = vld [vmem:[%s1 + $0x3f8] sm:$0xff]
  %v181 = vld [vmem:[%s2] sm:$0xf]
  %v183 = vlaneseq
  %v184 = vshrl.u32 %v183, 7
  %v185 = vsub.s32 0, %v184
  %v186 = vrot.slane %v181, %v185
  %v187 = vlaneseq
  %v188 = vshrl.u32 %v187, 7
  %v189 = vsub.s32 1, %v188
  %v190 = vrot.slane %v181, %v189
  %v191 = vlaneseq
  %v192 = vshrl.u32 %v191, 7
  %v193 = vsub.s32 2, %v192
  %v194 = vrot.slane %v181, %v193
  %v195 = vlaneseq
  %v196 = vshrl.u32 %v195, 7
  %v197 = vsub.s32 3, %v196
  %v198 = vrot.slane %v181, %v197
  %v235 = vunpack.c.l.b16 %v21
  %v236 = vunpack.c.h.b16 %v21
  %v237 = vunpack.c.l.b16 %v22
  %v238 = vunpack.c.h.b16 %v22
  %v239 = vunpack.c.l.b16 %v23
  %v240 = vunpack.c.h.b16 %v23
  %v241 = vunpack.c.l.b16 %v24
  %v242 = vunpack.c.h.b16 %v24
  %v243 = vunpack.c.l.b16 %v25
  %v244 = vunpack.c.h.b16 %v25
  %v245 = vunpack.c.l.b16 %v26
  %v246 = vunpack.c.h.b16 %v26
  %v247 = vunpack.c.l.b16 %v27
  %v248 = vunpack.c.h.b16 %v27
  %v249 = vunpack.c.l.b16 %v28
  %v250 = vunpack.c.h.b16 %v28
  %v251 = vunpack.c.l.b16 %v29
  %v252 = vunpack.c.h.b16 %v29
  %v253 = vunpack.c.l.b16 %v30
  %v254 = vunpack.c.h.b16 %v30
  %v255 = vunpack.c.l.b16 %v31
  %v256 = vunpack.c.h.b16 %v31
  %v257 = vunpack.c.l.b16 %v32
  %v258 = vunpack.c.h.b16 %v32
  %v259 = vunpack.c.l.b16 %v33
  %v260 = vunpack.c.h.b16 %v33
  %v261 = vunpack.c.l.b16 %v34
  %v262 = vunpack.c.h.b16 %v34
  %v263 = vunpack.c.l.b16 %v35
  %v264 = vunpack.c.h.b16 %v35
  %v265 = vunpack.c.l.b16 %v36
  %v266 = vunpack.c.h.b16 %v36
  %v267 = vunpack.c.l.b16 %v37
  %v268 = vunpack.c.h.b16 %v37
  %v269 = vunpack.c.l.b16 %v38
  %v270 = vunpack.c.h.b16 %v38
  %v271 = vunpack.c.l.b16 %v39
  %v272 = vunpack.c.h.b16 %v39
  %v273 = vunpack.c.l.b16 %v40
  %v274 = vunpack.c.h.b16 %v40
  %v275 = vunpack.c.l.b16 %v41
  %v276 = vunpack.c.h.b16 %v41
  %v277 = vunpack.c.l.b16 %v42
  %v278 = vunpack.c.h.b16 %v42
  %v279 = vunpack.c.l.b16 %v43
  %v280 = vunpack.c.h.b16 %v43
  %v281 = vunpack.c.l.b16 %v44
  %v282 = vunpack.c.h.b16 %v44
  %v283 = vunpack.c.l.b16 %v45
  %v284 = vunpack.c.h.b16 %v45
  %v285 = vunpack.c.l.b16 %v46
  %v286 = vunpack.c.h.b16 %v46
  %v287 = vunpack.c.l.b16 %v47
  %v288 = vunpack.c.h.b16 %v47
  %v289 = vunpack.c.l.b16 %v48
  %v290 = vunpack.c.h.b16 %v48
  %v291 = vunpack.c.l.b16 %v49
  %v292 = vunpack.c.h.b16 %v49
  %v293 = vunpack.c.l.b16 %v50
  %v294 = vunpack.c.h.b16 %v50
  %v295 = vunpack.c.l.b16 %v51
  %v296 = vunpack.c.h.b16 %v51
  %v297 = vunpack.c.l.b16 %v52
  %v298 = vunpack.c.h.b16 %v52
  %v299 = vpack.c.b16 %v239, %v235
  %v300 = vpack.c.b16 %v240, %v236
  %v301 = vpack.c.b16 %v241, %v237
  %v302 = vpack.c.b16 %v242, %v238
  %v303 = vpack.c.b16 %v247, %v243
  %v304 = vpack.c.b16 %v248, %v244
  %v305 = vpack.c.b16 %v249, %v245
  %v306 = vpack.c.b16 %v250, %v246
  %v307 = vpack.c.b16 %v255, %v251
  %v308 = vpack.c.b16 %v256, %v252
  %v309 = vpack.c.b16 %v257, %v253
  %v310 = vpack.c.b16 %v258, %v254
  %v311 = vpack.c.b16 %v263, %v259
  %v312 = vpack.c.b16 %v264, %v260
  %v313 = vpack.c.b16 %v265, %v261
  %v314 = vpack.c.b16 %v266, %v262
  %v315 = vpack.c.b16 %v271, %v267
  %v316 = vpack.c.b16 %v272, %v268
  %v317 = vpack.c.b16 %v273, %v269
  %v318 = vpack.c.b16 %v274, %v270
  %v319 = vpack.c.b16 %v279, %v275
  %v320 = vpack.c.b16 %v280, %v276
  %v321 = vpack.c.b16 %v281, %v277
  %v322 = vpack.c.b16 %v282, %v278
  %v323 = vpack.c.b16 %v287, %v283
  %v324 = vpack.c.b16 %v288, %v284
  %v325 = vpack.c.b16 %v289, %v285
  %v326 = vpack.c.b16 %v290, %v286
  %v327 = vpack.c.b16 %v295, %v291
  %v328 = vpack.c.b16 %v296, %v292
  %v329 = vpack.c.b16 %v297, %v293
  %v330 = vpack.c.b16 %v298, %v294
  %v491 = vunpack.c.l.b16 %v53
  %v492 = vunpack.c.h.b16 %v53
  %v493 = vunpack.c.l.b16 %v54
  %v494 = vunpack.c.h.b16 %v54
  %v495 = vunpack.c.l.b16 %v55
  %v496 = vunpack.c.h.b16 %v55
  %v497 = vunpack.c.l.b16 %v56
  %v498 = vunpack.c.h.b16 %v56
  %v499 = vunpack.c.l.b16 %v57
  %v500 = vunpack.c.h.b16 %v57
  %v501 = vunpack.c.l.b16 %v58
  %v502 = vunpack.c.h.b16 %v58
  %v503 = vunpack.c.l.b16 %v59
  %v504 = vunpack.c.h.b16 %v59
  %v505 = vunpack.c.l.b16 %v60
  %v506 = vunpack.c.h.b16 %v60
  %v507 = vunpack.c.l.b16 %v61
  %v508 = vunpack.c.h.b16 %v61
  %v509 = vunpack.c.l.b16 %v62
  %v510 = vunpack.c.h.b16 %v62
  %v511 = vunpack.c.l.b16 %v63
  %v512 = vunpack.c.h.b16 %v63
  %v513 = vunpack.c.l.b16 %v64
  %v514 = vunpack.c.h.b16 %v64
  %v515 = vunpack.c.l.b16 %v65
  %v516 = vunpack.c.h.b16 %v65
  %v517 = vunpack.c.l.b16 %v66
  %v518 = vunpack.c.h.b16 %v66
  %v519 = vunpack.c.l.b16 %v67
  %v520 = vunpack.c.h.b16 %v67
  %v521 = vunpack.c.l.b16 %v68
  %v522 = vunpack.c.h.b16 %v68
  %v523 = vunpack.c.l.b16 %v69
  %v524 = vunpack.c.h.b16 %v69
  %v525 = vunpack.c.l.b16 %v70
  %v526 = vunpack.c.h.b16 %v70
  %v527 = vunpack.c.l.b16 %v71
  %v528 = vunpack.c.h.b16 %v71
  %v529 = vunpack.c.l.b16 %v72
  %v530 = vunpack.c.h.b16 %v72
  %v531 = vunpack.c.l.b16 %v73
  %v532 = vunpack.c.h.b16 %v73
  %v533 = vunpack.c.l.b16 %v74
  %v534 = vunpack.c.h.b16 %v74
  %v535 = vunpack.c.l.b16 %v75
  %v536 = vunpack.c.h.b16 %v75
  %v537 = vunpack.c.l.b16 %v76
  %v538 = vunpack.c.h.b16 %v76
  %v539 = vunpack.c.l.b16 %v77
  %v540 = vunpack.c.h.b16 %v77
  %v541 = vunpack.c.l.b16 %v78
  %v542 = vunpack.c.h.b16 %v78
  %v543 = vunpack.c.l.b16 %v79
  %v544 = vunpack.c.h.b16 %v79
  %v545 = vunpack.c.l.b16 %v80
  %v546 = vunpack.c.h.b16 %v80
  %v547 = vunpack.c.l.b16 %v81
  %v548 = vunpack.c.h.b16 %v81
  %v549 = vunpack.c.l.b16 %v82
  %v550 = vunpack.c.h.b16 %v82
  %v551 = vunpack.c.l.b16 %v83
  %v552 = vunpack.c.h.b16 %v83
  %v553 = vunpack.c.l.b16 %v84
  %v554 = vunpack.c.h.b16 %v84
  %v555 = vunpack.c.l.b16 %v85
  %v556 = vunpack.c.h.b16 %v85
  %v557 = vunpack.c.l.b16 %v86
  %v558 = vunpack.c.h.b16 %v86
  %v559 = vunpack.c.l.b16 %v87
  %v560 = vunpack.c.h.b16 %v87
  %v561 = vunpack.c.l.b16 %v88
  %v562 = vunpack.c.h.b16 %v88
  %v563 = vunpack.c.l.b16 %v89
  %v564 = vunpack.c.h.b16 %v89
  %v565 = vunpack.c.l.b16 %v90
  %v566 = vunpack.c.h.b16 %v90
  %v567 = vunpack.c.l.b16 %v91
  %v568 = vunpack.c.h.b16 %v91
  %v569 = vunpack.c.l.b16 %v92
  %v570 = vunpack.c.h.b16 %v92
  %v571 = vunpack.c.l.b16 %v93
  %v572 = vunpack.c.h.b16 %v93
  %v573 = vunpack.c.l.b16 %v94
  %v574 = vunpack.c.h.b16 %v94
  %v575 = vunpack.c.l.b16 %v95
  %v576 = vunpack.c.h.b16 %v95
  %v577 = vunpack.c.l.b16 %v96
  %v578 = vunpack.c.h.b16 %v96
  %v579 = vunpack.c.l.b16 %v97
  %v580 = vunpack.c.h.b16 %v97
  %v581 = vunpack.c.l.b16 %v98
  %v582 = vunpack.c.h.b16 %v98
  %v583 = vunpack.c.l.b16 %v99
  %v584 = vunpack.c.h.b16 %v99
  %v585 = vunpack.c.l.b16 %v100
  %v586 = vunpack.c.h.b16 %v100
  %v587 = vunpack.c.l.b16 %v101
  %v588 = vunpack.c.h.b16 %v101
  %v589 = vunpack.c.l.b16 %v102
  %v590 = vunpack.c.h.b16 %v102
  %v591 = vunpack.c.l.b16 %v103
  %v592 = vunpack.c.h.b16 %v103
  %v593 = vunpack.c.l.b16 %v104
  %v594 = vunpack.c.h.b16 %v104
  %v595 = vunpack.c.l.b16 %v105
  %v596 = vunpack.c.h.b16 %v105
  %v597 = vunpack.c.l.b16 %v106
  %v598 = vunpack.c.h.b16 %v106
  %v599 = vunpack.c.l.b16 %v107
  %v600 = vunpack.c.h.b16 %v107
  %v601 = vunpack.c.l.b16 %v108
  %v602 = vunpack.c.h.b16 %v108
  %v603 = vunpack.c.l.b16 %v109
  %v604 = vunpack.c.h.b16 %v109
  %v605 = vunpack.c.l.b16 %v110
  %v606 = vunpack.c.h.b16 %v110
  %v607 = vunpack.c.l.b16 %v111
  %v608 = vunpack.c.h.b16 %v111
  %v609 = vunpack.c.l.b16 %v112
  %v610 = vunpack.c.h.b16 %v112
  %v611 = vunpack.c.l.b16 %v113
  %v612 = vunpack.c.h.b16 %v113
  %v613 = vunpack.c.l.b16 %v114
  %v614 = vunpack.c.h.b16 %v114
  %v615 = vunpack.c.l.b16 %v115
  %v616 = vunpack.c.h.b16 %v115
  %v617 = vunpack.c.l.b16 %v116
  %v618 = vunpack.c.h.b16 %v116
  %v619 = vunpack.c.l.b16 %v117
  %v620 = vunpack.c.h.b16 %v117
  %v621 = vunpack.c.l.b16 %v118
  %v622 = vunpack.c.h.b16 %v118
  %v623 = vunpack.c.l.b16 %v119
  %v624 = vunpack.c.h.b16 %v119
  %v625 = vunpack.c.l.b16 %v120
  %v626 = vunpack.c.h.b16 %v120
  %v627 = vunpack.c.l.b16 %v121
  %v628 = vunpack.c.h.b16 %v121
  %v629 = vunpack.c.l.b16 %v122
  %v630 = vunpack.c.h.b16 %v122
  %v631 = vunpack.c.l.b16 %v123
  %v632 = vunpack.c.h.b16 %v123
  %v633 = vunpack.c.l.b16 %v124
  %v634 = vunpack.c.h.b16 %v124
  %v635 = vunpack.c.l.b16 %v125
  %v636 = vunpack.c.h.b16 %v125
  %v637 = vunpack.c.l.b16 %v126
  %v638 = vunpack.c.h.b16 %v126
  %v639 = vunpack.c.l.b16 %v127
  %v640 = vunpack.c.h.b16 %v127
  %v641 = vunpack.c.l.b16 %v128
  %v642 = vunpack.c.h.b16 %v128
  %v643 = vunpack.c.l.b16 %v129
  %v644 = vunpack.c.h.b16 %v129
  %v645 = vunpack.c.l.b16 %v130
  %v646 = vunpack.c.h.b16 %v130
  %v647 = vunpack.c.l.b16 %v131
  %v648 = vunpack.c.h.b16 %v131
  %v649 = vunpack.c.l.b16 %v132
  %v650 = vunpack.c.h.b16 %v132
  %v651 = vunpack.c.l.b16 %v133
  %v652 = vunpack.c.h.b16 %v133
  %v653 = vunpack.c.l.b16 %v134
  %v654 = vunpack.c.h.b16 %v134
  %v655 = vunpack.c.l.b16 %v135
  %v656 = vunpack.c.h.b16 %v135
  %v657 = vunpack.c.l.b16 %v136
  %v658 = vunpack.c.h.b16 %v136
  %v659 = vunpack.c.l.b16 %v137
  %v660 = vunpack.c.h.b16 %v137
  %v661 = vunpack.c.l.b16 %v138
  %v662 = vunpack.c.h.b16 %v138
  %v663 = vunpack.c.l.b16 %v139
  %v664 = vunpack.c.h.b16 %v139
  %v665 = vunpack.c.l.b16 %v140
  %v666 = vunpack.c.h.b16 %v140
  %v667 = vunpack.c.l.b16 %v141
  %v668 = vunpack.c.h.b16 %v141
  %v669 = vunpack.c.l.b16 %v142
  %v670 = vunpack.c.h.b16 %v142
  %v671 = vunpack.c.l.b16 %v143
  %v672 = vunpack.c.h.b16 %v143
  %v673 = vunpack.c.l.b16 %v144
  %v674 = vunpack.c.h.b16 %v144
  %v675 = vunpack.c.l.b16 %v145
  %v676 = vunpack.c.h.b16 %v145
  %v677 = vunpack.c.l.b16 %v146
  %v678 = vunpack.c.h.b16 %v146
  %v679 = vunpack.c.l.b16 %v147
  %v680 = vunpack.c.h.b16 %v147
  %v681 = vunpack.c.l.b16 %v148
  %v682 = vunpack.c.h.b16 %v148
  %v683 = vunpack.c.l.b16 %v149
  %v684 = vunpack.c.h.b16 %v149
  %v685 = vunpack.c.l.b16 %v150
  %v686 = vunpack.c.h.b16 %v150
  %v687 = vunpack.c.l.b16 %v151
  %v688 = vunpack.c.h.b16 %v151
  %v689 = vunpack.c.l.b16 %v152
  %v690 = vunpack.c.h.b16 %v152
  %v691 = vunpack.c.l.b16 %v153
  %v692 = vunpack.c.h.b16 %v153
  %v693 = vunpack.c.l.b16 %v154
  %v694 = vunpack.c.h.b16 %v154
  %v695 = vunpack.c.l.b16 %v155
  %v696 = vunpack.c.h.b16 %v155
  %v697 = vunpack.c.l.b16 %v156
  %v698 = vunpack.c.h.b16 %v156
  %v699 = vunpack.c.l.b16 %v157
  %v700 = vunpack.c.h.b16 %v157
  %v701 = vunpack.c.l.b16 %v158
  %v702 = vunpack.c.h.b16 %v158
  %v703 = vunpack.c.l.b16 %v159
  %v704 = vunpack.c.h.b16 %v159
  %v705 = vunpack.c.l.b16 %v160
  %v706 = vunpack.c.h.b16 %v160
  %v707 = vunpack.c.l.b16 %v161
  %v708 = vunpack.c.h.b16 %v161
  %v709 = vunpack.c.l.b16 %v162
  %v710 = vunpack.c.h.b16 %v162
  %v711 = vunpack.c.l.b16 %v163
  %v712 = vunpack.c.h.b16 %v163
  %v713 = vunpack.c.l.b16 %v164
  %v714 = vunpack.c.h.b16 %v164
  %v715 = vunpack.c.l.b16 %v165
  %v716 = vunpack.c.h.b16 %v165
  %v717 = vunpack.c.l.b16 %v166
  %v718 = vunpack.c.h.b16 %v166
  %v719 = vunpack.c.l.b16 %v167
  %v720 = vunpack.c.h.b16 %v167
  %v721 = vunpack.c.l.b16 %v168
  %v722 = vunpack.c.h.b16 %v168
  %v723 = vunpack.c.l.b16 %v169
  %v724 = vunpack.c.h.b16 %v169
  %v725 = vunpack.c.l.b16 %v170
  %v726 = vunpack.c.h.b16 %v170
  %v727 = vunpack.c.l.b16 %v171
  %v728 = vunpack.c.h.b16 %v171
  %v729 = vunpack.c.l.b16 %v172
  %v730 = vunpack.c.h.b16 %v172
  %v731 = vunpack.c.l.b16 %v173
  %v732 = vunpack.c.h.b16 %v173
  %v733 = vunpack.c.l.b16 %v174
  %v734 = vunpack.c.h.b16 %v174
  %v735 = vunpack.c.l.b16 %v175
  %v736 = vunpack.c.h.b16 %v175
  %v737 = vunpack.c.l.b16 %v176
  %v738 = vunpack.c.h.b16 %v176
  %v739 = vunpack.c.l.b16 %v177
  %v740 = vunpack.c.h.b16 %v177
  %v741 = vunpack.c.l.b16 %v178
  %v742 = vunpack.c.h.b16 %v178
  %v743 = vunpack.c.l.b16 %v179
  %v744 = vunpack.c.h.b16 %v179
  %v745 = vunpack.c.l.b16 %v180
  %v746 = vunpack.c.h.b16 %v180
  %v747 = vpack.c.b16 %v495, %v491
  %v748 = vpack.c.b16 %v496, %v492
  %v749 = vpack.c.b16 %v497, %v493
  %v750 = vpack.c.b16 %v498, %v494
  %v751 = vpack.c.b16 %v503, %v499
  %v752 = vpack.c.b16 %v504, %v500
  %v753 = vpack.c.b16 %v505, %v501
  %v754 = vpack.c.b16 %v506, %v502
  %v755 = vpack.c.b16 %v511, %v507
  %v756 = vpack.c.b16 %v512, %v508
  %v757 = vpack.c.b16 %v513, %v509
  %v758 = vpack.c.b16 %v514, %v510
  %v759 = vpack.c.b16 %v519, %v515
  %v760 = vpack.c.b16 %v520, %v516
  %v761 = vpack.c.b16 %v521, %v517
  %v762 = vpack.c.b16 %v522, %v518
  %v763 = vpack.c.b16 %v527, %v523
  %v764 = vpack.c.b16 %v528, %v524
  %v765 = vpack.c.b16 %v529, %v525
  %v766 = vpack.c.b16 %v530, %v526
  %v767 = vpack.c.b16 %v535, %v531
  %v768 = vpack.c.b16 %v536, %v532
  %v769 = vpack.c.b16 %v537, %v533
  %v770 = vpack.c.b16 %v538, %v534
  %v771 = vpack.c.b16 %v543, %v539
  %v772 = vpack.c.b16 %v544, %v540
  %v773 = vpack.c.b16 %v545, %v541
  %v774 = vpack.c.b16 %v546, %v542
  %v775 = vpack.c.b16 %v551, %v547
  %v776 = vpack.c.b16 %v552, %v548
  %v777 = vpack.c.b16 %v553, %v549
  %v778 = vpack.c.b16 %v554, %v550
  %v779 = vpack.c.b16 %v559, %v555
  %v780 = vpack.c.b16 %v560, %v556
  %v781 = vpack.c.b16 %v561, %v557
  %v782 = vpack.c.b16 %v562, %v558
  %v783 = vpack.c.b16 %v567, %v563
  %v784 = vpack.c.b16 %v568, %v564
  %v785 = vpack.c.b16 %v569, %v565
  %v786 = vpack.c.b16 %v570, %v566
  %v787 = vpack.c.b16 %v575, %v571
  %v788 = vpack.c.b16 %v576, %v572
  %v789 = vpack.c.b16 %v577, %v573
  %v790 = vpack.c.b16 %v578, %v574
  %v791 = vpack.c.b16 %v583, %v579
  %v792 = vpack.c.b16 %v584, %v580
  %v793 = vpack.c.b16 %v585, %v581
  %v794 = vpack.c.b16 %v586, %v582
  %v795 = vpack.c.b16 %v591, %v587
  %v796 = vpack.c.b16 %v592, %v588
  %v797 = vpack.c.b16 %v593, %v589
  %v798 = vpack.c.b16 %v594, %v590
  %v799 = vpack.c.b16 %v599, %v595
  %v800 = vpack.c.b16 %v600, %v596
  %v801 = vpack.c.b16 %v601, %v597
  %v802 = vpack.c.b16 %v602, %v598
  %v803 = vpack.c.b16 %v607, %v603
  %v804 = vpack.c.b16 %v608, %v604
  %v805 = vpack.c.b16 %v609, %v605
  %v806 = vpack.c.b16 %v610, %v606
  %v807 = vpack.c.b16 %v615, %v611
  %v808 = vpack.c.b16 %v616, %v612
  %v809 = vpack.c.b16 %v617, %v613
  %v810 = vpack.c.b16 %v618, %v614
  %v811 = vpack.c.b16 %v623, %v619
  %v812 = vpack.c.b16 %v624, %v620
  %v813 = vpack.c.b16 %v625, %v621
  %v814 = vpack.c.b16 %v626, %v622
  %v815 = vpack.c.b16 %v631, %v627
  %v816 = vpack.c.b16 %v632, %v628
  %v817 = vpack.c.b16 %v633, %v629
  %v818 = vpack.c.b16 %v634, %v630
  %v819 = vpack.c.b16 %v639, %v635
  %v820 = vpack.c.b16 %v640, %v636
  %v821 = vpack.c.b16 %v641, %v637
  %v822 = vpack.c.b16 %v642, %v638
  %v823 = vpack.c.b16 %v647, %v643
  %v824 = vpack.c.b16 %v648, %v644
  %v825 = vpack.c.b16 %v649, %v645
  %v826 = vpack.c.b16 %v650, %v646
  %v827 = vpack.c.b16 %v655, %v651
  %v828 = vpack.c.b16 %v656, %v652
  %v829 = vpack.c.b16 %v657, %v653
  %v830 = vpack.c.b16 %v658, %v654
  %v831 = vpack.c.b16 %v663, %v659
  %v832 = vpack.c.b16 %v664, %v660
  %v833 = vpack.c.b16 %v665, %v661
  %v834 = vpack.c.b16 %v666, %v662
  %v835 = vpack.c.b16 %v671, %v667
  %v836 = vpack.c.b16 %v672, %v668
  %v837 = vpack.c.b16 %v673, %v669
  %v838 = vpack.c.b16 %v674, %v670
  %v839 = vpack.c.b16 %v679, %v675
  %v840 = vpack.c.b16 %v680, %v676
  %v841 = vpack.c.b16 %v681, %v677
  %v842 = vpack.c.b16 %v682, %v678
  %v843 = vpack.c.b16 %v687, %v683
  %v844 = vpack.c.b16 %v688, %v684
  %v845 = vpack.c.b16 %v689, %v685
  %v846 = vpack.c.b16 %v690, %v686
  %v847 = vpack.c.b16 %v695, %v691
  %v848 = vpack.c.b16 %v696, %v692
  %v849 = vpack.c.b16 %v697, %v693
  %v850 = vpack.c.b16 %v698, %v694
  %v851 = vpack.c.b16 %v703, %v699
  %v852 = vpack.c.b16 %v704, %v700
  %v853 = vpack.c.b16 %v705, %v701
  %v854 = vpack.c.b16 %v706, %v702
  %v855 = vpack.c.b16 %v711, %v707
  %v856 = vpack.c.b16 %v712, %v708
  %v857 = vpack.c.b16 %v713, %v709
  %v858 = vpack.c.b16 %v714, %v710
  %v859 = vpack.c.b16 %v719, %v715
  %v860 = vpack.c.b16 %v720, %v716
  %v861 = vpack.c.b16 %v721, %v717
  %v862 = vpack.c.b16 %v722, %v718
  %v863 = vpack.c.b16 %v727, %v723
  %v864 = vpack.c.b16 %v728, %v724
  %v865 = vpack.c.b16 %v729, %v725
  %v866 = vpack.c.b16 %v730, %v726
  %v867 = vpack.c.b16 %v735, %v731
  %v868 = vpack.c.b16 %v736, %v732
  %v869 = vpack.c.b16 %v737, %v733
  %v870 = vpack.c.b16 %v738, %v734
  %v871 = vpack.c.b16 %v743, %v739
  %v872 = vpack.c.b16 %v744, %v740
  %v873 = vpack.c.b16 %v745, %v741
  %v874 = vpack.c.b16 %v746, %v742
  %1003 = vmatprep.subr.bf16.mxu0 %v748
  %1004 = vmatpush1.bf16.msra.mxu0 %v747
  %1005 = vmatprep.subr.bf16.mxu0 %v752
  %1006 = vmatpush1.bf16.msra.mxu0 %v751
  %1007 = vmatprep.subr.bf16.mxu0 %v756
  %1008 = vmatpush1.bf16.msra.mxu0 %v755
  %1009 = vmatprep.subr.bf16.mxu0 %v760
  %1010 = vmatpush1.bf16.msra.mxu0 %v759
  %1011 = vmatprep.subr.bf16.mxu0 %v764
  %1012 = vmatpush1.bf16.msra.mxu0 %v763
  %1013 = vmatprep.subr.bf16.mxu0 %v768
  %1014 = vmatpush1.bf16.msra.mxu0 %v767
  %1015 = vmatprep.subr.bf16.mxu0 %v772
  %1016 = vmatpush1.bf16.msra.mxu0 %v771
  %1017 = vmatprep.subr.bf16.mxu0 %v776
  %1018 = vmatpush1.bf16.msra.mxu0 %v775
  %1019 = vmatprep.subr.bf16.mxu0 %v780
  %1020 = vmatpush1.bf16.msra.mxu0 %v779
  %1021 = vmatprep.subr.bf16.mxu0 %v784
  %1022 = vmatpush1.bf16.msra.mxu0 %v783
  %1023 = vmatprep.subr.bf16.mxu0 %v788
  %1024 = vmatpush1.bf16.msra.mxu0 %v787
  %1025 = vmatprep.subr.bf16.mxu0 %v792
  %1026 = vmatpush1.bf16.msra.mxu0 %v791
  %1027 = vmatprep.subr.bf16.mxu0 %v796
  %1028 = vmatpush1.bf16.msra.mxu0 %v795
  %1029 = vmatprep.subr.bf16.mxu0 %v800
  %1030 = vmatpush1.bf16.msra.mxu0 %v799
  %1031 = vmatprep.subr.bf16.mxu0 %v804
  %1032 = vmatpush1.bf16.msra.mxu0 %v803
  %1033 = vmatprep.subr.bf16.mxu0 %v808
  %1034 = vmatpush1.bf16.msra.mxu0 %v807
  %1035 = vmatprep.mubr.bf16.mxu0 %v300
  %1036 = vmatmul.mubr.bf16.gmra.mrb[0].mxu0 %v299
  %v1037 = vpop.f32.mrb[0].mxu0
  %v1038 = vadd.f32 %v186, %v1037
  %v1039 = vpop.f32.mrb[0].mxu0
  %v1040 = vadd.f32 %v190, %v1039
  %v1041 = vpop.f32.mrb[0].mxu0
  %v1042 = vadd.f32 %v186, %v1041
  %v1043 = vpop.f32.mrb[0].mxu0
  %v1044 = vadd.f32 %v190, %v1043
  %1045 = vmatprep.mubr.bf16.mxu0 %v304
  %1046 = vmatmul.mubr.bf16.gmra.mrb[0].mxu0 %v303
  %v1047 = vpop.f32.mrb[0].mxu0
  %v1048 = vadd.f32 %v186, %v1047
  %v1049 = vpop.f32.mrb[0].mxu0
  %v1050 = vadd.f32 %v190, %v1049
  %v1051 = vpop.f32.mrb[0].mxu0
  %v1052 = vadd.f32 %v186, %v1051
  %v1053 = vpop.f32.mrb[0].mxu0
  %v1054 = vadd.f32 %v190, %v1053
  %1055 = vmatprep.mubr.bf16.mxu0 %v308
  %1056 = vmatmul.mubr.bf16.gmra.mrb[0].mxu0 %v307
  %v1057 = vpop.f32.mrb[0].mxu0
  %v1058 = vadd.f32 %v186, %v1057
  %v1059 = vpop.f32.mrb[0].mxu0
  %v1060 = vadd.f32 %v190, %v1059
  %v1061 = vpop.f32.mrb[0].mxu0
  %v1062 = vadd.f32 %v186, %v1061
  %v1063 = vpop.f32.mrb[0].mxu0
  %v1064 = vadd.f32 %v190, %v1063
  %1065 = vmatprep.mubr.bf16.mxu0 %v312
  %1066 = vmatmul.mubr.bf16.gmra.mrb[0].mxu0 %v311
  %v1067 = vpop.f32.mrb[0].mxu0
  %v1068 = vadd.f32 %v186, %v1067
  %v1069 = vpop.f32.mrb[0].mxu0
  %v1070 = vadd.f32 %v190, %v1069
  %v1071 = vpop.f32.mrb[0].mxu0
  %v1072 = vadd.f32 %v186, %v1071
  %v1073 = vpop.f32.mrb[0].mxu0
  %v1074 = vadd.f32 %v190, %v1073
  %1075 = vmatprep.mubr.bf16.mxu0 %v316
  %1076 = vmatmul.mubr.bf16.gmra.mrb[0].mxu0 %v315
  %v1077 = vpop.f32.mrb[0].mxu0
  %v1078 = vadd.f32 %v186, %v1077
  %v1079 = vpop.f32.mrb[0].mxu0
  %v1080 = vadd.f32 %v190, %v1079
  %v1081 = vpop.f32.mrb[0].mxu0
  %v1082 = vadd.f32 %v186, %v1081
  %v1083 = vpop.f32.mrb[0].mxu0
  %v1084 = vadd.f32 %v190, %v1083
  %1085 = vmatprep.mubr.bf16.mxu0 %v320
  %1086 = vmatmul.mubr.bf16.gmra.mrb[0].mxu0 %v319
  %v1087 = vpop.f32.mrb[0].mxu0
  %v1088 = vadd.f32 %v186, %v1087
  %v1089 = vpop.f32.mrb[0].mxu0
  %v1090 = vadd.f32 %v190, %v1089
  %v1091 = vpop.f32.mrb[0].mxu0
  %v1092 = vadd.f32 %v186, %v1091
  %v1093 = vpop.f32.mrb[0].mxu0
  %v1094 = vadd.f32 %v190, %v1093
  %1095 = vmatprep.mubr.bf16.mxu0 %v324
  %1096 = vmatmul.mubr.bf16.gmra.mrb[0].mxu0 %v323
  %v1097 = vpop.f32.mrb[0].mxu0
  %v1098 = vadd.f32 %v186, %v1097
  %v1099 = vpop.f32.mrb[0].mxu0
  %v1100 = vadd.f32 %v190, %v1099
  %v1101 = vpop.f32.mrb[0].mxu0
  %v1102 = vadd.f32 %v186, %v1101
  %v1103 = vpop.f32.mrb[0].mxu0
  %v1104 = vadd.f32 %v190, %v1103
  %1105 = vmatprep.mubr.bf16.mxu0 %v328
  %1106 = vmatmul.mubr.bf16.gmra.mrb[0].mxu0 %v327
  %v1107 = vpop.f32.mrb[0].mxu0
  %v1108 = vadd.f32 %v186, %v1107
  %v1109 = vpop.f32.mrb[0].mxu0
  %v1110 = vadd.f32 %v190, %v1109
  %v1111 = vpop.f32.mrb[0].mxu0
  %v1112 = vadd.f32 %v186, %v1111
  %v1113 = vpop.f32.mrb[0].mxu0
  %v1114 = vadd.f32 %v190, %v1113
  %1115 = vdwg.mxu0
  %1116 = vmatprep.subr.bf16.mxu0 %v812
  %1117 = vmatpush1.bf16.msra.mxu0 %v811
  %1118 = vmatprep.subr.bf16.mxu0 %v816
  %1119 = vmatpush1.bf16.msra.mxu0 %v815
  %1120 = vmatprep.subr.bf16.mxu0 %v820
  %1121 = vmatpush1.bf16.msra.mxu0 %v819
  %1122 = vmatprep.subr.bf16.mxu0 %v824
  %1123 = vmatpush1.bf16.msra.mxu0 %v823
  %1124 = vmatprep.subr.bf16.mxu0 %v828
  %1125 = vmatpush1.bf16.msra.mxu0 %v827
  %1126 = vmatprep.subr.bf16.mxu0 %v832
  %1127 = vmatpush1.bf16.msra.mxu0 %v831
  %1128 = vmatprep.subr.bf16.mxu0 %v836
  %1129 = vmatpush1.bf16.msra.mxu0 %v835
  %1130 = vmatprep.subr.bf16.mxu0 %v840
  %1131 = vmatpush1.bf16.msra.mxu0 %v839
  %1132 = vmatprep.subr.bf16.mxu0 %v844
  %1133 = vmatpush1.bf16.msra.mxu0 %v843
  %1134 = vmatprep.subr.bf16.mxu0 %v848
  %1135 = vmatpush1.bf16.msra.mxu0 %v847
  %1136 = vmatprep.subr.bf16.mxu0 %v852
  %1137 = vmatpush1.bf16.msra.mxu0 %v851
  %1138 = vmatprep.subr.bf16.mxu0 %v856
  %1139 = vmatpush1.bf16.msra.mxu0 %v855
  %1140 = vmatprep.subr.bf16.mxu0 %v860
  %1141 = vmatpush1.bf16.msra.mxu0 %v859
  %1142 = vmatprep.subr.bf16.mxu0 %v864
  %1143 = vmatpush1.bf16.msra.mxu0 %v863
  %1144 = vmatprep.subr.bf16.mxu0 %v868
  %1145 = vmatpush1.bf16.msra.mxu0 %v867
  %1146 = vmatprep.subr.bf16.mxu0 %v872
  %1147 = vmatpush1.bf16.msra.mxu0 %v871
  %1148 = vmatprep.mubr.bf16.mxu0 %v302
  %1149 = vmatmul.mubr.bf16.gmra.mrb[0].mxu0 %v301
  %v1150 = vpop.f32.mrb[0].mxu0
  %v1151 = vadd.f32 %v1038, %v1150
  %v1152 = vpop.f32.mrb[0].mxu0
  %v1153 = vadd.f32 %v1040, %v1152
  %v1154 = vpop.f32.mrb[0].mxu0
  %v1155 = vadd.f32 %v1042, %v1154
  %v1156 = vpop.f32.mrb[0].mxu0
  %v1157 = vadd.f32 %v1044, %v1156
  %1158 = vmatprep.mubr.bf16.mxu0 %v306
  %1159 = vmatmul.mubr.bf16.gmra.mrb[0].mxu0 %v305
  %v1160 = vpop.f32.mrb[0].mxu0
  %v1161 = vadd.f32 %v1048, %v1160
  %v1162 = vpop.f32.mrb[0].mxu0
  %v1163 = vadd.f32 %v1050, %v1162
  %v1164 = vpop.f32.mrb[0].mxu0
  %v1165 = vadd.f32 %v1052, %v1164
  %v1166 = vpop.f32.mrb[0].mxu0
  %v1167 = vadd.f32 %v1054, %v1166
  %1168 = vmatprep.mubr.bf16.mxu0 %v310
  %1169 = vmatmul.mubr.bf16.gmra.mrb[0].mxu0 %v309
  %v1170 = vpop.f32.mrb[0].mxu0
  %v1171 = vadd.f32 %v1058, %v1170
  %v1172 = vpop.f32.mrb[0].mxu0
  %v1173 = vadd.f32 %v1060, %v1172
  %v1174 = vpop.f32.mrb[0].mxu0
  %v1175 = vadd.f32 %v1062, %v1174
  %v1176 = vpop.f32.mrb[0].mxu0
  %v1177 = vadd.f32 %v1064, %v1176
  %1178 = vmatprep.mubr.bf16.mxu0 %v314
  %1179 = vmatmul.mubr.bf16.gmra.mrb[0].mxu0 %v313
  %v1180 = vpop.f32.mrb[0].mxu0
  %v1181 = vadd.f32 %v1068, %v1180
  %v1182 = vpop.f32.mrb[0].mxu0
  %v1183 = vadd.f32 %v1070, %v1182
  %v1184 = vpop.f32.mrb[0].mxu0
  %v1185 = vadd.f32 %v1072, %v1184
  %v1186 = vpop.f32.mrb[0].mxu0
  %v1187 = vadd.f32 %v1074, %v1186
  %1188 = vmatprep.mubr.bf16.mxu0 %v318
  %1189 = vmatmul.mubr.bf16.gmra.mrb[0].mxu0 %v317
  %v1190 = vpop.f32.mrb[0].mxu0
  %v1191 = vadd.f32 %v1078, %v1190
  %v1192 = vpop.f32.mrb[0].mxu0
  %v1193 = vadd.f32 %v1080, %v1192
  %v1194 = vpop.f32.mrb[0].mxu0
  %v1195 = vadd.f32 %v1082, %v1194
  %v1196 = vpop.f32.mrb[0].mxu0
  %v1197 = vadd.f32 %v1084, %v1196
  %1198 = vmatprep.mubr.bf16.mxu0 %v322
  %1199 = vmatmul.mubr.bf16.gmra.mrb[0].mxu0 %v321
  %v1200 = vpop.f32.mrb[0].mxu0
  %v1201 = vadd.f32 %v1088, %v1200
  %v1202 = vpop.f32.mrb[0].mxu0
  %v1203 = vadd.f32 %v1090, %v1202
  %v1204 = vpop.f32.mrb[0].mxu0
  %v1205 = vadd.f32 %v1092, %v1204
  %v1206 = vpop.f32.mrb[0].mxu0
  %v1207 = vadd.f32 %v1094, %v1206
  %1208 = vmatprep.mubr.bf16.mxu0 %v326
  %1209 = vmatmul.mubr.bf16.gmra.mrb[0].mxu0 %v325
  %v1210 = vpop.f32.mrb[0].mxu0
  %v1211 = vadd.f32 %v1098, %v1210
  %v1212 = vpop.f32.mrb[0].mxu0
  %v1213 = vadd.f32 %v1100, %v1212
  %v1214 = vpop.f32.mrb[0].mxu0
  %v1215 = vadd.f32 %v1102, %v1214
  %v1216 = vpop.f32.mrb[0].mxu0
  %v1217 = vadd.f32 %v1104, %v1216
  %1218 = vmatprep.mubr.bf16.mxu0 %v330
  %1219 = vmatmul.mubr.bf16.gmra.mrb[0].mxu0 %v329
  %v1220 = vpop.f32.mrb[0].mxu0
  %v1221 = vadd.f32 %v1108, %v1220
  %v1222 = vpop.f32.mrb[0].mxu0
  %v1223 = vadd.f32 %v1110, %v1222
  %v1224 = vpop.f32.mrb[0].mxu0
  %v1225 = vadd.f32 %v1112, %v1224
  %v1226 = vpop.f32.mrb[0].mxu0
  %v1227 = vadd.f32 %v1114, %v1226
  %1228 = vdwg.mxu0
  %1229 = vmatprep.subr.bf16.mxu0 %v750
  %1230 = vmatpush1.bf16.msra.mxu0 %v749
  %1231 = vmatprep.subr.bf16.mxu0 %v754
  %1232 = vmatpush1.bf16.msra.mxu0 %v753
  %1233 = vmatprep.subr.bf16.mxu0 %v758
  %1234 = vmatpush1.bf16.msra.mxu0 %v757
  %1235 = vmatprep.subr.bf16.mxu0 %v762
  %1236 = vmatpush1.bf16.msra.mxu0 %v761
  %1237 = vmatprep.subr.bf16.mxu0 %v766
  %1238 = vmatpush1.bf16.msra.mxu0 %v765
  %1239 = vmatprep.subr.bf16.mxu0 %v770
  %1240 = vmatpush1.bf16.msra.mxu0 %v769
  %1241 = vmatprep.subr.bf16.mxu0 %v774
  %1242 = vmatpush1.bf16.msra.mxu0 %v773
  %1243 = vmatprep.subr.bf16.mxu0 %v778
  %1244 = vmatpush1.bf16.msra.mxu0 %v777
  %1245 = vmatprep.subr.bf16.mxu0 %v782
  %1246 = vmatpush1.bf16.msra.mxu0 %v781
  %1247 = vmatprep.subr.bf16.mxu0 %v786
  %1248 = vmatpush1.bf16.msra.mxu0 %v785
  %1249 = vmatprep.subr.bf16.mxu0 %v790
  %1250 = vmatpush1.bf16.msra.mxu0 %v789
  %1251 = vmatprep.subr.bf16.mxu0 %v794
  %1252 = vmatpush1.bf16.msra.mxu0 %v793
  %1253 = vmatprep.subr.bf16.mxu0 %v798
  %1254 = vmatpush1.bf16.msra.mxu0 %v797
  %1255 = vmatprep.subr.bf16.mxu0 %v802
  %1256 = vmatpush1.bf16.msra.mxu0 %v801
  %1257 = vmatprep.subr.bf16.mxu0 %v806
  %1258 = vmatpush1.bf16.msra.mxu0 %v805
  %1259 = vmatprep.subr.bf16.mxu0 %v810
  %1260 = vmatpush1.bf16.msra.mxu0 %v809
  %1261 = vmatprep.mubr.bf16.mxu0 %v300
  %1262 = vmatmul.mubr.bf16.gmra.mrb[0].mxu0 %v299
  %v1263 = vpop.f32.mrb[0].mxu0
  %v1264 = vadd.f32 %v194, %v1263
  %v1265 = vpop.f32.mrb[0].mxu0
  %v1266 = vadd.f32 %v198, %v1265
  %v1267 = vpop.f32.mrb[0].mxu0
  %v1268 = vadd.f32 %v194, %v1267
  %v1269 = vpop.f32.mrb[0].mxu0
  %v1270 = vadd.f32 %v198, %v1269
  %1271 = vmatprep.mubr.bf16.mxu0 %v304
  %1272 = vmatmul.mubr.bf16.gmra.mrb[0].mxu0 %v303
  %v1273 = vpop.f32.mrb[0].mxu0
  %v1274 = vadd.f32 %v194, %v1273
  %v1275 = vpop.f32.mrb[0].mxu0
  %v1276 = vadd.f32 %v198, %v1275
  %v1277 = vpop.f32.mrb[0].mxu0
  %v1278 = vadd.f32 %v194, %v1277
  %v1279 = vpop.f32.mrb[0].mxu0
  %v1280 = vadd.f32 %v198, %v1279
  %1281 = vmatprep.mubr.bf16.mxu0 %v308
  %1282 = vmatmul.mubr.bf16.gmra.mrb[0].mxu0 %v307
  %v1283 = vpop.f32.mrb[0].mxu0
  %v1284 = vadd.f32 %v194, %v1283
  %v1285 = vpop.f32.mrb[0].mxu0
  %v1286 = vadd.f32 %v198, %v1285
  %v1287 = vpop.f32.mrb[0].mxu0
  %v1288 = vadd.f32 %v194, %v1287
  %v1289 = vpop.f32.mrb[0].mxu0
  %v1290 = vadd.f32 %v198, %v1289
  %1291 = vmatprep.mubr.bf16.mxu0 %v312
  %1292 = vmatmul.mubr.bf16.gmra.mrb[0].mxu0 %v311
  %v1293 = vpop.f32.mrb[0].mxu0
  %v1294 = vadd.f32 %v194, %v1293
  %v1295 = vpop.f32.mrb[0].mxu0
  %v1296 = vadd.f32 %v198, %v1295
  %v1297 = vpop.f32.mrb[0].mxu0
  %v1298 = vadd.f32 %v194, %v1297
  %v1299 = vpop.f32.mrb[0].mxu0
  %v1300 = vadd.f32 %v198, %v1299
  %1301 = vmatprep.mubr.bf16.mxu0 %v316
  %1302 = vmatmul.mubr.bf16.gmra.mrb[0].mxu0 %v315
  %v1303 = vpop.f32.mrb[0].mxu0
  %v1304 = vadd.f32 %v194, %v1303
  %v1305 = vpop.f32.mrb[0].mxu0
  %v1306 = vadd.f32 %v198, %v1305
  %v1307 = vpop.f32.mrb[0].mxu0
  %v1308 = vadd.f32 %v194, %v1307
  %v1309 = vpop.f32.mrb[0].mxu0
  %v1310 = vadd.f32 %v198, %v1309
  %1311 = vmatprep.mubr.bf16.mxu0 %v320
  %1312 = vmatmul.mubr.bf16.gmra.mrb[0].mxu0 %v319
  %v1313 = vpop.f32.mrb[0].mxu0
  %v1314 = vadd.f32 %v194, %v1313
  %v1315 = vpop.f32.mrb[0].mxu0
  %v1316 = vadd.f32 %v198, %v1315
  %v1317 = vpop.f32.mrb[0].mxu0
  %v1318 = vadd.f32 %v194, %v1317
  %v1319 = vpop.f32.mrb[0].mxu0
  %v1320 = vadd.f32 %v198, %v1319
  %1321 = vmatprep.mubr.bf16.mxu0 %v324
  %1322 = vmatmul.mubr.bf16.gmra.mrb[0].mxu0 %v323
  %v1323 = vpop.f32.mrb[0].mxu0
  %v1324 = vadd.f32 %v194, %v1323
  %v1325 = vpop.f32.mrb[0].mxu0
  %v1326 = vadd.f32 %v198, %v1325
  %v1327 = vpop.f32.mrb[0].mxu0
  %v1328 = vadd.f32 %v194, %v1327
  %v1329 = vpop.f32.mrb[0].mxu0
  %v1330 = vadd.f32 %v198, %v1329
  %1331 = vmatprep.mubr.bf16.mxu0 %v328
  %1332 = vmatmul.mubr.bf16.gmra.mrb[0].mxu0 %v327
  %v1333 = vpop.f32.mrb[0].mxu0
  %v1334 = vadd.f32 %v194, %v1333
  %v1335 = vpop.f32.mrb[0].mxu0
  %v1336 = vadd.f32 %v198, %v1335
  %v1337 = vpop.f32.mrb[0].mxu0
  %v1338 = vadd.f32 %v194, %v1337
  %v1339 = vpop.f32.mrb[0].mxu0
  %v1340 = vadd.f32 %v198, %v1339
  %1341 = vdwg.mxu0
  %1342 = vmatprep.subr.bf16.mxu0 %v814
  %1343 = vmatpush1.bf16.msra.mxu0 %v813
  %1344 = vmatprep.subr.bf16.mxu0 %v818
  %1345 = vmatpush1.bf16.msra.mxu0 %v817
  %1346 = vmatprep.subr.bf16.mxu0 %v822
  %1347 = vmatpush1.bf16.msra.mxu0 %v821
  %1348 = vmatprep.subr.bf16.mxu0 %v826
  %1349 = vmatpush1.bf16.msra.mxu0 %v825
  %1350 = vmatprep.subr.bf16.mxu0 %v830
  %1351 = vmatpush1.bf16.msra.mxu0 %v829
  %1352 = vmatprep.subr.bf16.mxu0 %v834
  %1353 = vmatpush1.bf16.msra.mxu0 %v833
  %1354 = vmatprep.subr.bf16.mxu0 %v838
  %1355 = vmatpush1.bf16.msra.mxu0 %v837
  %1356 = vmatprep.subr.bf16.mxu0 %v842
  %1357 = vmatpush1.bf16.msra.mxu0 %v841
  %1358 = vmatprep.subr.bf16.mxu0 %v846
  %1359 = vmatpush1.bf16.msra.mxu0 %v845
  %1360 = vmatprep.subr.bf16.mxu0 %v850
  %1361 = vmatpush1.bf16.msra.mxu0 %v849
  %1362 = vmatprep.subr.bf16.mxu0 %v854
  %1363 = vmatpush1.bf16.msra.mxu0 %v853
  %1364 = vmatprep.subr.bf16.mxu0 %v858
  %1365 = vmatpush1.bf16.msra.mxu0 %v857
  %1366 = vmatprep.subr.bf16.mxu0 %v862
  %1367 = vmatpush1.bf16.msra.mxu0 %v861
  %1368 = vmatprep.subr.bf16.mxu0 %v866
  %1369 = vmatpush1.bf16.msra.mxu0 %v865
  %1370 = vmatprep.subr.bf16.mxu0 %v870
  %1371 = vmatpush1.bf16.msra.mxu0 %v869
  %1372 = vmatprep.subr.bf16.mxu0 %v874
  %1373 = vmatpush1.bf16.msra.mxu0 %v873
  %1374 = vmatprep.mubr.bf16.mxu0 %v302
  %1375 = vmatmul.mubr.bf16.gmra.mrb[0].mxu0 %v301
  %v1376 = vpop.f32.mrb[0].mxu0
  %v1377 = vadd.f32 %v1264, %v1376
  %v1378 = vpop.f32.mrb[0].mxu0
  %v1379 = vadd.f32 %v1266, %v1378
  %v1380 = vpop.f32.mrb[0].mxu0
  %v1381 = vadd.f32 %v1268, %v1380
  %v1382 = vpop.f32.mrb[0].mxu0
  %v1383 = vadd.f32 %v1270, %v1382
  %1384 = vmatprep.mubr.bf16.mxu0 %v306
  %1385 = vmatmul.mubr.bf16.gmra.mrb[0].mxu0 %v305
  %v1386 = vpop.f32.mrb[0].mxu0
  %v1387 = vadd.f32 %v1274, %v1386
  %v1388 = vpop.f32.mrb[0].mxu0
  %v1389 = vadd.f32 %v1276, %v1388
  %v1390 = vpop.f32.mrb[0].mxu0
  %v1391 = vadd.f32 %v1278, %v1390
  %v1392 = vpop.f32.mrb[0].mxu0
  %v1393 = vadd.f32 %v1280, %v1392
  %1394 = vmatprep.mubr.bf16.mxu0 %v310
  %1395 = vmatmul.mubr.bf16.gmra.mrb[0].mxu0 %v309
  %v1396 = vpop.f32.mrb[0].mxu0
  %v1397 = vadd.f32 %v1284, %v1396
  %v1398 = vpop.f32.mrb[0].mxu0
  %v1399 = vadd.f32 %v1286, %v1398
  %v1400 = vpop.f32.mrb[0].mxu0
  %v1401 = vadd.f32 %v1288, %v1400
  %v1402 = vpop.f32.mrb[0].mxu0
  %v1403 = vadd.f32 %v1290, %v1402
  %1404 = vmatprep.mubr.bf16.mxu0 %v314
  %1405 = vmatmul.mubr.bf16.gmra.mrb[0].mxu0 %v313
  %v1406 = vpop.f32.mrb[0].mxu0
  %v1407 = vadd.f32 %v1294, %v1406
  %v1408 = vpop.f32.mrb[0].mxu0
  %v1409 = vadd.f32 %v1296, %v1408
  %v1410 = vpop.f32.mrb[0].mxu0
  %v1411 = vadd.f32 %v1298, %v1410
  %v1412 = vpop.f32.mrb[0].mxu0
  %v1413 = vadd.f32 %v1300, %v1412
  %1414 = vmatprep.mubr.bf16.mxu0 %v318
  %1415 = vmatmul.mubr.bf16.gmra.mrb[0].mxu0 %v317
  %v1416 = vpop.f32.mrb[0].mxu0
  %v1417 = vadd.f32 %v1304, %v1416
  %v1418 = vpop.f32.mrb[0].mxu0
  %v1419 = vadd.f32 %v1306, %v1418
  %v1420 = vpop.f32.mrb[0].mxu0
  %v1421 = vadd.f32 %v1308, %v1420
  %v1422 = vpop.f32.mrb[0].mxu0
  %v1423 = vadd.f32 %v1310, %v1422
  %1424 = vmatprep.mubr.bf16.mxu0 %v322
  %1425 = vmatmul.mubr.bf16.gmra.mrb[0].mxu0 %v321
  %v1426 = vpop.f32.mrb[0].mxu0
  %v1427 = vadd.f32 %v1314, %v1426
  %v1428 = vpop.f32.mrb[0].mxu0
  %v1429 = vadd.f32 %v1316, %v1428
  %v1430 = vpop.f32.mrb[0].mxu0
  %v1431 = vadd.f32 %v1318, %v1430
  %v1432 = vpop.f32.mrb[0].mxu0
  %v1433 = vadd.f32 %v1320, %v1432
  %1434 = vmatprep.mubr.bf16.mxu0 %v326
  %1435 = vmatmul.mubr.bf16.gmra.mrb[0].mxu0 %v325
  %v1436 = vpop.f32.mrb[0].mxu0
  %v1437 = vadd.f32 %v1324, %v1436
  %v1438 = vpop.f32.mrb[0].mxu0
  %v1439 = vadd.f32 %v1326, %v1438
  %v1440 = vpop.f32.mrb[0].mxu0
  %v1441 = vadd.f32 %v1328, %v1440
  %v1442 = vpop.f32.mrb[0].mxu0
  %v1443 = vadd.f32 %v1330, %v1442
  %1444 = vmatprep.mubr.bf16.mxu0 %v330
  %1445 = vmatmul.mubr.bf16.gmra.mrb[0].mxu0 %v329
  %v1446 = vpop.f32.mrb[0].mxu0
  %v1447 = vadd.f32 %v1334, %v1446
  %v1448 = vpop.f32.mrb[0].mxu0
  %v1449 = vadd.f32 %v1336, %v1448
  %v1450 = vpop.f32.mrb[0].mxu0
  %v1451 = vadd.f32 %v1338, %v1450
  %v1452 = vpop.f32.mrb[0].mxu0
  %v1453 = vadd.f32 %v1340, %v1452
  %1454 = vdwg.mxu0
  %v1455 = vmax.f32 %v1151, 0.0
  %v1456 = vmax.f32 %v1153, 0.0
  %v1457 = vmax.f32 %v1377, 0.0
  %v1458 = vmax.f32 %v1379, 0.0
  %v1459 = vmax.f32 %v1155, 0.0
  %v1460 = vmax.f32 %v1157, 0.0
  %v1461 = vmax.f32 %v1381, 0.0
  %v1462 = vmax.f32 %v1383, 0.0
  %v1463 = vmax.f32 %v1161, 0.0
  %v1464 = vmax.f32 %v1163, 0.0
  %v1465 = vmax.f32 %v1387, 0.0
  %v1466 = vmax.f32 %v1389, 0.0
  %v1467 = vmax.f32 %v1165, 0.0
  %v1468 = vmax.f32 %v1167, 0.0
  %v1469 = vmax.f32 %v1391, 0.0
  %v1470 = vmax.f32 %v1393, 0.0
  %v1471 = vmax.f32 %v1171, 0.0
  %v1472 = vmax.f32 %v1173, 0.0
  %v1473 = vmax.f32 %v1397, 0.0
  %v1474 = vmax.f32 %v1399, 0.0
  %v1475 = vmax.f32 %v1175, 0.0
  %v1476 = vmax.f32 %v1177, 0.0
  %v1477 = vmax.f32 %v1401, 0.0
  %v1478 = vmax.f32 %v1403, 0.0
  %v1479 = vmax.f32 %v1181, 0.0
  %v1480 = vmax.f32 %v1183, 0.0
  %v1481 = vmax.f32 %v1407, 0.0
  %v1482 = vmax.f32 %v1409, 0.0
  %v1483 = vmax.f32 %v1185, 0.0
  %v1484 = vmax.f32 %v1187, 0.0
  %v1485 = vmax.f32 %v1411, 0.0
  %v1486 = vmax.f32 %v1413, 0.0
  %v1487 = vmax.f32 %v1191, 0.0
  %v1488 = vmax.f32 %v1193, 0.0
  %v1489 = vmax.f32 %v1417, 0.0
  %v1490 = vmax.f32 %v1419, 0.0
  %v1491 = vmax.f32 %v1195, 0.0
  %v1492 = vmax.f32 %v1197, 0.0
  %v1493 = vmax.f32 %v1421, 0.0
  %v1494 = vmax.f32 %v1423, 0.0
  %v1495 = vmax.f32 %v1201, 0.0
  %v1496 = vmax.f32 %v1203, 0.0
  %v1497 = vmax.f32 %v1427, 0.0
  %v1498 = vmax.f32 %v1429, 0.0
  %v1499 = vmax.f32 %v1205, 0.0
  %v1500 = vmax.f32 %v1207, 0.0
  %v1501 = vmax.f32 %v1431, 0.0
  %v1502 = vmax.f32 %v1433, 0.0
  %v1503 = vmax.f32 %v1211, 0.0
  %v1504 = vmax.f32 %v1213, 0.0
  %v1505 = vmax.f32 %v1437, 0.0
  %v1506 = vmax.f32 %v1439, 0.0
  %v1507 = vmax.f32 %v1215, 0.0
  %v1508 = vmax.f32 %v1217, 0.0
  %v1509 = vmax.f32 %v1441, 0.0
  %v1510 = vmax.f32 %v1443, 0.0
  %v1511 = vmax.f32 %v1221, 0.0
  %v1512 = vmax.f32 %v1223, 0.0
  %v1513 = vmax.f32 %v1447, 0.0
  %v1514 = vmax.f32 %v1449, 0.0
  %v1515 = vmax.f32 %v1225, 0.0
  %v1516 = vmax.f32 %v1227, 0.0
  %v1517 = vmax.f32 %v1451, 0.0
  %v1518 = vmax.f32 %v1453, 0.0
  %v1519 = vpack.c.bf16 %v1459, %v1455
  %v1520 = vpack.c.bf16 %v1460, %v1456
  %v1521 = vpack.c.bf16 %v1461, %v1457
  %v1522 = vpack.c.bf16 %v1462, %v1458
  %v1523 = vpack.c.bf16 %v1467, %v1463
  %v1524 = vpack.c.bf16 %v1468, %v1464
  %v1525 = vpack.c.bf16 %v1469, %v1465
  %v1526 = vpack.c.bf16 %v1470, %v1466
  %v1527 = vpack.c.bf16 %v1475, %v1471
  %v1528 = vpack.c.bf16 %v1476, %v1472
  %v1529 = vpack.c.bf16 %v1477, %v1473
  %v1530 = vpack.c.bf16 %v1478, %v1474
  %v1531 = vpack.c.bf16 %v1483, %v1479
  %v1532 = vpack.c.bf16 %v1484, %v1480
  %v1533 = vpack.c.bf16 %v1485, %v1481
  %v1534 = vpack.c.bf16 %v1486, %v1482
  %v1535 = vpack.c.bf16 %v1491, %v1487
  %v1536 = vpack.c.bf16 %v1492, %v1488
  %v1537 = vpack.c.bf16 %v1493, %v1489
  %v1538 = vpack.c.bf16 %v1494, %v1490
  %v1539 = vpack.c.bf16 %v1499, %v1495
  %v1540 = vpack.c.bf16 %v1500, %v1496
  %v1541 = vpack.c.bf16 %v1501, %v1497
  %v1542 = vpack.c.bf16 %v1502, %v1498
  %v1543 = vpack.c.bf16 %v1507, %v1503
  %v1544 = vpack.c.bf16 %v1508, %v1504
  %v1545 = vpack.c.bf16 %v1509, %v1505
  %v1546 = vpack.c.bf16 %v1510, %v1506
  %v1547 = vpack.c.bf16 %v1515, %v1511
  %v1548 = vpack.c.bf16 %v1516, %v1512
  %v1549 = vpack.c.bf16 %v1517, %v1513
  %v1550 = vpack.c.bf16 %v1518, %v1514
  %s1551 = scalar_lea.vmem %s1, 1024
  %v1552 = vld [vmem:[%s1551] sm:$0xff]
  %v1553 = vld [vmem:[%s1551 + $0x8] sm:$0xff]
  %v1554 = vld [vmem:[%s1551 + $0x10] sm:$0xff]
  %v1555 = vld [vmem:[%s1551 + $0x18] sm:$0xff]
  %v1556 = vld [vmem:[%s1551 + $0x20] sm:$0xff]
  %v1557 = vld [vmem:[%s1551 + $0x28] sm:$0xff]
  %v1558 = vld [vmem:[%s1551 + $0x30] sm:$0xff]
  %v1559 = vld [vmem:[%s1551 + $0x38] sm:$0xff]
  %v1560 = vld [vmem:[%s1551 + $0x40] sm:$0xff]
  %v1561 = vld [vmem:[%s1551 + $0x48] sm:$0xff]
  %v1562 = vld [vmem:[%s1551 + $0x50] sm:$0xff]
  %v1563 = vld [vmem:[%s1551 + $0x58] sm:$0xff]
  %v1564 = vld [vmem:[%s1551 + $0x60] sm:$0xff]
  %v1565 = vld [vmem:[%s1551 + $0x68] sm:$0xff]
  %v1566 = vld [vmem:[%s1551 + $0x70] sm:$0xff]
  %v1567 = vld [vmem:[%s1551 + $0x78] sm:$0xff]
  %v1568 = vld [vmem:[%s1551 + $0x80] sm:$0xff]
  %v1569 = vld [vmem:[%s1551 + $0x88] sm:$0xff]
  %v1570 = vld [vmem:[%s1551 + $0x90] sm:$0xff]
  %v1571 = vld [vmem:[%s1551 + $0x98] sm:$0xff]
  %v1572 = vld [vmem:[%s1551 + $0xa0] sm:$0xff]
  %v1573 = vld [vmem:[%s1551 + $0xa8] sm:$0xff]
  %v1574 = vld [vmem:[%s1551 + $0xb0] sm:$0xff]
  %v1575 = vld [vmem:[%s1551 + $0xb8] sm:$0xff]
  %v1576 = vld [vmem:[%s1551 + $0xc0] sm:$0xff]
  %v1577 = vld [vmem:[%s1551 + $0xc8] sm:$0xff]
  %v1578 = vld [vmem:[%s1551 + $0xd0] sm:$0xff]
  %v1579 = vld [vmem:[%s1551 + $0xd8] sm:$0xff]
  %v1580 = vld [vmem:[%s1551 + $0xe0] sm:$0xff]
  %v1581 = vld [vmem:[%s1551 + $0xe8] sm:$0xff]
  %v1582 = vld [vmem:[%s1551 + $0xf0] sm:$0xff]
  %v1583 = vld [vmem:[%s1551 + $0xf8] sm:$0xff]
  %v1584 = vld [vmem:[%s1551 + $0x100] sm:$0xff]
  %v1585 = vld [vmem:[%s1551 + $0x108] sm:$0xff]
  %v1586 = vld [vmem:[%s1551 + $0x110] sm:$0xff]
  %v1587 = vld [vmem:[%s1551 + $0x118] sm:$0xff]
  %v1588 = vld [vmem:[%s1551 + $0x120] sm:$0xff]
  %v1589 = vld [vmem:[%s1551 + $0x128] sm:$0xff]
  %v1590 = vld [vmem:[%s1551 + $0x130] sm:$0xff]
  %v1591 = vld [vmem:[%s1551 + $0x138] sm:$0xff]
  %v1592 = vld [vmem:[%s1551 + $0x140] sm:$0xff]
  %v1593 = vld [vmem:[%s1551 + $0x148] sm:$0xff]
  %v1594 = vld [vmem:[%s1551 + $0x150] sm:$0xff]
  %v1595 = vld [vmem:[%s1551 + $0x158] sm:$0xff]
  %v1596 = vld [vmem:[%s1551 + $0x160] sm:$0xff]
  %v1597 = vld [vmem:[%s1551 + $0x168] sm:$0xff]
  %v1598 = vld [vmem:[%s1551 + $0x170] sm:$0xff]
  %v1599 = vld [vmem:[%s1551 + $0x178] sm:$0xff]
  %v1600 = vld [vmem:[%s1551 + $0x180] sm:$0xff]
  %v1601 = vld [vmem:[%s1551 + $0x188] sm:$0xff]
  %v1602 = vld [vmem:[%s1551 + $0x190] sm:$0xff]
  %v1603 = vld [vmem:[%s1551 + $0x198] sm:$0xff]
  %v1604 = vld [vmem:[%s1551 + $0x1a0] sm:$0xff]
  %v1605 = vld [vmem:[%s1551 + $0x1a8] sm:$0xff]
  %v1606 = vld [vmem:[%s1551 + $0x1b0] sm:$0xff]
  %v1607 = vld [vmem:[%s1551 + $0x1b8] sm:$0xff]
  %v1608 = vld [vmem:[%s1551 + $0x1c0] sm:$0xff]
  %v1609 = vld [vmem:[%s1551 + $0x1c8] sm:$0xff]
  %v1610 = vld [vmem:[%s1551 + $0x1d0] sm:$0xff]
  %v1611 = vld [vmem:[%s1551 + $0x1d8] sm:$0xff]
  %v1612 = vld [vmem:[%s1551 + $0x1e0] sm:$0xff]
  %v1613 = vld [vmem:[%s1551 + $0x1e8] sm:$0xff]
  %v1614 = vld [vmem:[%s1551 + $0x1f0] sm:$0xff]
  %v1615 = vld [vmem:[%s1551 + $0x1f8] sm:$0xff]
  %v1616 = vld [vmem:[%s1551 + $0x200] sm:$0xff]
  %v1617 = vld [vmem:[%s1551 + $0x208] sm:$0xff]
  %v1618 = vld [vmem:[%s1551 + $0x210] sm:$0xff]
  %v1619 = vld [vmem:[%s1551 + $0x218] sm:$0xff]
  %v1620 = vld [vmem:[%s1551 + $0x220] sm:$0xff]
  %v1621 = vld [vmem:[%s1551 + $0x228] sm:$0xff]
  %v1622 = vld [vmem:[%s1551 + $0x230] sm:$0xff]
  %v1623 = vld [vmem:[%s1551 + $0x238] sm:$0xff]
  %v1624 = vld [vmem:[%s1551 + $0x240] sm:$0xff]
  %v1625 = vld [vmem:[%s1551 + $0x248] sm:$0xff]
  %v1626 = vld [vmem:[%s1551 + $0x250] sm:$0xff]
  %v1627 = vld [vmem:[%s1551 + $0x258] sm:$0xff]
  %v1628 = vld [vmem:[%s1551 + $0x260] sm:$0xff]
  %v1629 = vld [vmem:[%s1551 + $0x268] sm:$0xff]
  %v1630 = vld [vmem:[%s1551 + $0x270] sm:$0xff]
  %v1631 = vld [vmem:[%s1551 + $0x278] sm:$0xff]
  %v1632 = vld [vmem:[%s1551 + $0x280] sm:$0xff]
  %v1633 = vld [vmem:[%s1551 + $0x288] sm:$0xff]
  %v1634 = vld [vmem:[%s1551 + $0x290] sm:$0xff]
  %v1635 = vld [vmem:[%s1551 + $0x298] sm:$0xff]
  %v1636 = vld [vmem:[%s1551 + $0x2a0] sm:$0xff]
  %v1637 = vld [vmem:[%s1551 + $0x2a8] sm:$0xff]
  %v1638 = vld [vmem:[%s1551 + $0x2b0] sm:$0xff]
  %v1639 = vld [vmem:[%s1551 + $0x2b8] sm:$0xff]
  %v1640 = vld [vmem:[%s1551 + $0x2c0] sm:$0xff]
  %v1641 = vld [vmem:[%s1551 + $0x2c8] sm:$0xff]
  %v1642 = vld [vmem:[%s1551 + $0x2d0] sm:$0xff]
  %v1643 = vld [vmem:[%s1551 + $0x2d8] sm:$0xff]
  %v1644 = vld [vmem:[%s1551 + $0x2e0] sm:$0xff]
  %v1645 = vld [vmem:[%s1551 + $0x2e8] sm:$0xff]
  %v1646 = vld [vmem:[%s1551 + $0x2f0] sm:$0xff]
  %v1647 = vld [vmem:[%s1551 + $0x2f8] sm:$0xff]
  %v1648 = vld [vmem:[%s1551 + $0x300] sm:$0xff]
  %v1649 = vld [vmem:[%s1551 + $0x308] sm:$0xff]
  %v1650 = vld [vmem:[%s1551 + $0x310] sm:$0xff]
  %v1651 = vld [vmem:[%s1551 + $0x318] sm:$0xff]
  %v1652 = vld [vmem:[%s1551 + $0x320] sm:$0xff]
  %v1653 = vld [vmem:[%s1551 + $0x328] sm:$0xff]
  %v1654 = vld [vmem:[%s1551 + $0x330] sm:$0xff]
  %v1655 = vld [vmem:[%s1551 + $0x338] sm:$0xff]
  %v1656 = vld [vmem:[%s1551 + $0x340] sm:$0xff]
  %v1657 = vld [vmem:[%s1551 + $0x348] sm:$0xff]
  %v1658 = vld [vmem:[%s1551 + $0x350] sm:$0xff]
  %v1659 = vld [vmem:[%s1551 + $0x358] sm:$0xff]
  %v1660 = vld [vmem:[%s1551 + $0x360] sm:$0xff]
  %v1661 = vld [vmem:[%s1551 + $0x368] sm:$0xff]
  %v1662 = vld [vmem:[%s1551 + $0x370] sm:$0xff]
  %v1663 = vld [vmem:[%s1551 + $0x378] sm:$0xff]
  %v1664 = vld [vmem:[%s1551 + $0x380] sm:$0xff]
  %v1665 = vld [vmem:[%s1551 + $0x388] sm:$0xff]
  %v1666 = vld [vmem:[%s1551 + $0x390] sm:$0xff]
  %v1667 = vld [vmem:[%s1551 + $0x398] sm:$0xff]
  %v1668 = vld [vmem:[%s1551 + $0x3a0] sm:$0xff]
  %v1669 = vld [vmem:[%s1551 + $0x3a8] sm:$0xff]
  %v1670 = vld [vmem:[%s1551 + $0x3b0] sm:$0xff]
  %v1671 = vld [vmem:[%s1551 + $0x3b8] sm:$0xff]
  %v1672 = vld [vmem:[%s1551 + $0x3c0] sm:$0xff]
  %v1673 = vld [vmem:[%s1551 + $0x3c8] sm:$0xff]
  %v1674 = vld [vmem:[%s1551 + $0x3d0] sm:$0xff]
  %v1675 = vld [vmem:[%s1551 + $0x3d8] sm:$0xff]
  %v1676 = vld [vmem:[%s1551 + $0x3e0] sm:$0xff]
  %v1677 = vld [vmem:[%s1551 + $0x3e8] sm:$0xff]
  %v1678 = vld [vmem:[%s1551 + $0x3f0] sm:$0xff]
  %v1679 = vld [vmem:[%s1551 + $0x3f8] sm:$0xff]
  %s1680 = scalar_lea.vmem %s2, 4
  %v1681 = vld [vmem:[%s1680] sm:$0xf]
  %v1683 = vlaneseq
  %v1684 = vshrl.u32 %v1683, 7
  %v1685 = vsub.s32 0, %v1684
  %v1686 = vrot.slane %v1681, %v1685
  %v1687 = vlaneseq
  %v1688 = vshrl.u32 %v1687, 7
  %v1689 = vsub.s32 1, %v1688
  %v1690 = vrot.slane %v1681, %v1689
  %v1691 = vlaneseq
  %v1692 = vshrl.u32 %v1691, 7
  %v1693 = vsub.s32 2, %v1692
  %v1694 = vrot.slane %v1681, %v1693
  %v1695 = vlaneseq
  %v1696 = vshrl.u32 %v1695, 7
  %v1697 = vsub.s32 3, %v1696
  %v1698 = vrot.slane %v1681, %v1697
  %v1831 = vunpack.c.l.b16 %v1552
  %v1832 = vunpack.c.h.b16 %v1552
  %v1833 = vunpack.c.l.b16 %v1553
  %v1834 = vunpack.c.h.b16 %v1553
  %v1835 = vunpack.c.l.b16 %v1554
  %v1836 = vunpack.c.h.b16 %v1554
  %v1837 = vunpack.c.l.b16 %v1555
  %v1838 = vunpack.c.h.b16 %v1555
  %v1839 = vunpack.c.l.b16 %v1556
  %v1840 = vunpack.c.h.b16 %v1556
  %v1841 = vunpack.c.l.b16 %v1557
  %v1842 = vunpack.c.h.b16 %v1557
  %v1843 = vunpack.c.l.b16 %v1558
  %v1844 = vunpack.c.h.b16 %v1558
  %v1845 = vunpack.c.l.b16 %v1559
  %v1846 = vunpack.c.h.b16 %v1559
  %v1847 = vunpack.c.l.b16 %v1560
  %v1848 = vunpack.c.h.b16 %v1560
  %v1849 = vunpack.c.l.b16 %v1561
  %v1850 = vunpack.c.h.b16 %v1561
  %v1851 = vunpack.c.l.b16 %v1562
  %v1852 = vunpack.c.h.b16 %v1562
  %v1853 = vunpack.c.l.b16 %v1563
  %v1854 = vunpack.c.h.b16 %v1563
  %v1855 = vunpack.c.l.b16 %v1564
  %v1856 = vunpack.c.h.b16 %v1564
  %v1857 = vunpack.c.l.b16 %v1565
  %v1858 = vunpack.c.h.b16 %v1565
  %v1859 = vunpack.c.l.b16 %v1566
  %v1860 = vunpack.c.h.b16 %v1566
  %v1861 = vunpack.c.l.b16 %v1567
  %v1862 = vunpack.c.h.b16 %v1567
  %v1863 = vunpack.c.l.b16 %v1568
  %v1864 = vunpack.c.h.b16 %v1568
  %v1865 = vunpack.c.l.b16 %v1569
  %v1866 = vunpack.c.h.b16 %v1569
  %v1867 = vunpack.c.l.b16 %v1570
  %v1868 = vunpack.c.h.b16 %v1570
  %v1869 = vunpack.c.l.b16 %v1571
  %v1870 = vunpack.c.h.b16 %v1571
  %v1871 = vunpack.c.l.b16 %v1572
  %v1872 = vunpack.c.h.b16 %v1572
  %v1873 = vunpack.c.l.b16 %v1573
  %v1874 = vunpack.c.h.b16 %v1573
  %v1875 = vunpack.c.l.b16 %v1574
  %v1876 = vunpack.c.h.b16 %v1574
  %v1877 = vunpack.c.l.b16 %v1575
  %v1878 = vunpack.c.h.b16 %v1575
  %v1879 = vunpack.c.l.b16 %v1576
  %v1880 = vunpack.c.h.b16 %v1576
  %v1881 = vunpack.c.l.b16 %v1577
  %v1882 = vunpack.c.h.b16 %v1577
  %v1883 = vunpack.c.l.b16 %v1578
  %v1884 = vunpack.c.h.b16 %v1578
  %v1885 = vunpack.c.l.b16 %v1579
  %v1886 = vunpack.c.h.b16 %v1579
  %v1887 = vunpack.c.l.b16 %v1580
  %v1888 = vunpack.c.h.b16 %v1580
  %v1889 = vunpack.c.l.b16 %v1581
  %v1890 = vunpack.c.h.b16 %v1581
  %v1891 = vunpack.c.l.b16 %v1582
  %v1892 = vunpack.c.h.b16 %v1582
  %v1893 = vunpack.c.l.b16 %v1583
  %v1894 = vunpack.c.h.b16 %v1583
  %v1895 = vunpack.c.l.b16 %v1584
  %v1896 = vunpack.c.h.b16 %v1584
  %v1897 = vunpack.c.l.b16 %v1585
  %v1898 = vunpack.c.h.b16 %v1585
  %v1899 = vunpack.c.l.b16 %v1586
  %v1900 = vunpack.c.h.b16 %v1586
  %v1901 = vunpack.c.l.b16 %v1587
  %v1902 = vunpack.c.h.b16 %v1587
  %v1903 = vunpack.c.l.b16 %v1588
  %v1904 = vunpack.c.h.b16 %v1588
  %v1905 = vunpack.c.l.b16 %v1589
  %v1906 = vunpack.c.h.b16 %v1589
  %v1907 = vunpack.c.l.b16 %v1590
  %v1908 = vunpack.c.h.b16 %v1590
  %v1909 = vunpack.c.l.b16 %v1591
  %v1910 = vunpack.c.h.b16 %v1591
  %v1911 = vunpack.c.l.b16 %v1592
  %v1912 = vunpack.c.h.b16 %v1592
  %v1913 = vunpack.c.l.b16 %v1593
  %v1914 = vunpack.c.h.b16 %v1593
  %v1915 = vunpack.c.l.b16 %v1594
  %v1916 = vunpack.c.h.b16 %v1594
  %v1917 = vunpack.c.l.b16 %v1595
  %v1918 = vunpack.c.h.b16 %v1595
  %v1919 = vunpack.c.l.b16 %v1596
  %v1920 = vunpack.c.h.b16 %v1596
  %v1921 = vunpack.c.l.b16 %v1597
  %v1922 = vunpack.c.h.b16 %v1597
  %v1923 = vunpack.c.l.b16 %v1598
  %v1924 = vunpack.c.h.b16 %v1598
  %v1925 = vunpack.c.l.b16 %v1599
  %v1926 = vunpack.c.h.b16 %v1599
  %v1927 = vunpack.c.l.b16 %v1600
  %v1928 = vunpack.c.h.b16 %v1600
  %v1929 = vunpack.c.l.b16 %v1601
  %v1930 = vunpack.c.h.b16 %v1601
  %v1931 = vunpack.c.l.b16 %v1602
  %v1932 = vunpack.c.h.b16 %v1602
  %v1933 = vunpack.c.l.b16 %v1603
  %v1934 = vunpack.c.h.b16 %v1603
  %v1935 = vunpack.c.l.b16 %v1604
  %v1936 = vunpack.c.h.b16 %v1604
  %v1937 = vunpack.c.l.b16 %v1605
  %v1938 = vunpack.c.h.b16 %v1605
  %v1939 = vunpack.c.l.b16 %v1606
  %v1940 = vunpack.c.h.b16 %v1606
  %v1941 = vunpack.c.l.b16 %v1607
  %v1942 = vunpack.c.h.b16 %v1607
  %v1943 = vunpack.c.l.b16 %v1608
  %v1944 = vunpack.c.h.b16 %v1608
  %v1945 = vunpack.c.l.b16 %v1609
  %v1946 = vunpack.c.h.b16 %v1609
  %v1947 = vunpack.c.l.b16 %v1610
  %v1948 = vunpack.c.h.b16 %v1610
  %v1949 = vunpack.c.l.b16 %v1611
  %v1950 = vunpack.c.h.b16 %v1611
  %v1951 = vunpack.c.l.b16 %v1612
  %v1952 = vunpack.c.h.b16 %v1612
  %v1953 = vunpack.c.l.b16 %v1613
  %v1954 = vunpack.c.h.b16 %v1613
  %v1955 = vunpack.c.l.b16 %v1614
  %v1956 = vunpack.c.h.b16 %v1614
  %v1957 = vunpack.c.l.b16 %v1615
  %v1958 = vunpack.c.h.b16 %v1615
  %v1959 = vunpack.c.l.b16 %v1616
  %v1960 = vunpack.c.h.b16 %v1616
  %v1961 = vunpack.c.l.b16 %v1617
  %v1962 = vunpack.c.h.b16 %v1617
  %v1963 = vunpack.c.l.b16 %v1618
  %v1964 = vunpack.c.h.b16 %v1618
  %v1965 = vunpack.c.l.b16 %v1619
  %v1966 = vunpack.c.h.b16 %v1619
  %v1967 = vunpack.c.l.b16 %v1620
  %v1968 = vunpack.c.h.b16 %v1620
  %v1969 = vunpack.c.l.b16 %v1621
  %v1970 = vunpack.c.h.b16 %v1621
  %v1971 = vunpack.c.l.b16 %v1622
  %v1972 = vunpack.c.h.b16 %v1622
  %v1973 = vunpack.c.l.b16 %v1623
  %v1974 = vunpack.c.h.b16 %v1623
  %v1975 = vunpack.c.l.b16 %v1624
  %v1976 = vunpack.c.h.b16 %v1624
  %v1977 = vunpack.c.l.b16 %v1625
  %v1978 = vunpack.c.h.b16 %v1625
  %v1979 = vunpack.c.l.b16 %v1626
  %v1980 = vunpack.c.h.b16 %v1626
  %v1981 = vunpack.c.l.b16 %v1627
  %v1982 = vunpack.c.h.b16 %v1627
  %v1983 = vunpack.c.l.b16 %v1628
  %v1984 = vunpack.c.h.b16 %v1628
  %v1985 = vunpack.c.l.b16 %v1629
  %v1986 = vunpack.c.h.b16 %v1629
  %v1987 = vunpack.c.l.b16 %v1630
  %v1988 = vunpack.c.h.b16 %v1630
  %v1989 = vunpack.c.l.b16 %v1631
  %v1990 = vunpack.c.h.b16 %v1631
  %v1991 = vunpack.c.l.b16 %v1632
  %v1992 = vunpack.c.h.b16 %v1632
  %v1993 = vunpack.c.l.b16 %v1633
  %v1994 = vunpack.c.h.b16 %v1633
  %v1995 = vunpack.c.l.b16 %v1634
  %v1996 = vunpack.c.h.b16 %v1634
  %v1997 = vunpack.c.l.b16 %v1635
  %v1998 = vunpack.c.h.b16 %v1635
  %v1999 = vunpack.c.l.b16 %v1636
  %v2000 = vunpack.c.h.b16 %v1636
  %v2001 = vunpack.c.l.b16 %v1637
  %v2002 = vunpack.c.h.b16 %v1637
  %v2003 = vunpack.c.l.b16 %v1638
  %v2004 = vunpack.c.h.b16 %v1638
  %v2005 = vunpack.c.l.b16 %v1639
  %v2006 = vunpack.c.h.b16 %v1639
  %v2007 = vunpack.c.l.b16 %v1640
  %v2008 = vunpack.c.h.b16 %v1640
  %v2009 = vunpack.c.l.b16 %v1641
  %v2010 = vunpack.c.h.b16 %v1641
  %v2011 = vunpack.c.l.b16 %v1642
  %v2012 = vunpack.c.h.b16 %v1642
  %v2013 = vunpack.c.l.b16 %v1643
  %v2014 = vunpack.c.h.b16 %v1643
  %v2015 = vunpack.c.l.b16 %v1644
  %v2016 = vunpack.c.h.b16 %v1644
  %v2017 = vunpack.c.l.b16 %v1645
  %v2018 = vunpack.c.h.b16 %v1645
  %v2019 = vunpack.c.l.b16 %v1646
  %v2020 = vunpack.c.h.b16 %v1646
  %v2021 = vunpack.c.l.b16 %v1647
  %v2022 = vunpack.c.h.b16 %v1647
  %v2023 = vunpack.c.l.b16 %v1648
  %v2024 = vunpack.c.h.b16 %v1648
  %v2025 = vunpack.c.l.b16 %v1649
  %v2026 = vunpack.c.h.b16 %v1649
  %v2027 = vunpack.c.l.b16 %v1650
  %v2028 = vunpack.c.h.b16 %v1650
  %v2029 = vunpack.c.l.b16 %v1651
  %v2030 = vunpack.c.h.b16 %v1651
  %v2031 = vunpack.c.l.b16 %v1652
  %v2032 = vunpack.c.h.b16 %v1652
  %v2033 = vunpack.c.l.b16 %v1653
  %v2034 = vunpack.c.h.b16 %v1653
  %v2035 = vunpack.c.l.b16 %v1654
  %v2036 = vunpack.c.h.b16 %v1654
  %v2037 = vunpack.c.l.b16 %v1655
  %v2038 = vunpack.c.h.b16 %v1655
  %v2039 = vunpack.c.l.b16 %v1656
  %v2040 = vunpack.c.h.b16 %v1656
  %v2041 = vunpack.c.l.b16 %v1657
  %v2042 = vunpack.c.h.b16 %v1657
  %v2043 = vunpack.c.l.b16 %v1658
  %v2044 = vunpack.c.h.b16 %v1658
  %v2045 = vunpack.c.l.b16 %v1659
  %v2046 = vunpack.c.h.b16 %v1659
  %v2047 = vunpack.c.l.b16 %v1660
  %v2048 = vunpack.c.h.b16 %v1660
  %v2049 = vunpack.c.l.b16 %v1661
  %v2050 = vunpack.c.h.b16 %v1661
  %v2051 = vunpack.c.l.b16 %v1662
  %v2052 = vunpack.c.h.b16 %v1662
  %v2053 = vunpack.c.l.b16 %v1663
  %v2054 = vunpack.c.h.b16 %v1663
  %v2055 = vunpack.c.l.b16 %v1664
  %v2056 = vunpack.c.h.b16 %v1664
  %v2057 = vunpack.c.l.b16 %v1665
  %v2058 = vunpack.c.h.b16 %v1665
  %v2059 = vunpack.c.l.b16 %v1666
  %v2060 = vunpack.c.h.b16 %v1666
  %v2061 = vunpack.c.l.b16 %v1667
  %v2062 = vunpack.c.h.b16 %v1667
  %v2063 = vunpack.c.l.b16 %v1668
  %v2064 = vunpack.c.h.b16 %v1668
  %v2065 = vunpack.c.l.b16 %v1669
  %v2066 = vunpack.c.h.b16 %v1669
  %v2067 = vunpack.c.l.b16 %v1670
  %v2068 = vunpack.c.h.b16 %v1670
  %v2069 = vunpack.c.l.b16 %v1671
  %v2070 = vunpack.c.h.b16 %v1671
  %v2071 = vunpack.c.l.b16 %v1672
  %v2072 = vunpack.c.h.b16 %v1672
  %v2073 = vunpack.c.l.b16 %v1673
  %v2074 = vunpack.c.h.b16 %v1673
  %v2075 = vunpack.c.l.b16 %v1674
  %v2076 = vunpack.c.h.b16 %v1674
  %v2077 = vunpack.c.l.b16 %v1675
  %v2078 = vunpack.c.h.b16 %v1675
  %v2079 = vunpack.c.l.b16 %v1676
  %v2080 = vunpack.c.h.b16 %v1676
  %v2081 = vunpack.c.l.b16 %v1677
  %v2082 = vunpack.c.h.b16 %v1677
  %v2083 = vunpack.c.l.b16 %v1678
  %v2084 = vunpack.c.h.b16 %v1678
  %v2085 = vunpack.c.l.b16 %v1679
  %v2086 = vunpack.c.h.b16 %v1679
  %v2087 = vpack.c.b16 %v1835, %v1831
  %v2088 = vpack.c.b16 %v1836, %v1832
  %v2089 = vpack.c.b16 %v1837, %v1833
  %v2090 = vpack.c.b16 %v1838, %v1834
  %v2091 = vpack.c.b16 %v1843, %v1839
  %v2092 = vpack.c.b16 %v1844, %v1840
  %v2093 = vpack.c.b16 %v1845, %v1841
  %v2094 = vpack.c.b16 %v1846, %v1842
  %v2095 = vpack.c.b16 %v1851, %v1847
  %v2096 = vpack.c.b16 %v1852, %v1848
  %v2097 = vpack.c.b16 %v1853, %v1849
  %v2098 = vpack.c.b16 %v1854, %v1850
  %v2099 = vpack.c.b16 %v1859, %v1855
  %v2100 = vpack.c.b16 %v1860, %v1856
  %v2101 = vpack.c.b16 %v1861, %v1857
  %v2102 = vpack.c.b16 %v1862, %v1858
  %v2103 = vpack.c.b16 %v1867, %v1863
  %v2104 = vpack.c.b16 %v1868, %v1864
  %v2105 = vpack.c.b16 %v1869, %v1865
  %v2106 = vpack.c.b16 %v1870, %v1866
  %v2107 = vpack.c.b16 %v1875, %v1871
  %v2108 = vpack.c.b16 %v1876, %v1872
  %v2109 = vpack.c.b16 %v1877, %v1873
  %v2110 = vpack.c.b16 %v1878, %v1874
  %v2111 = vpack.c.b16 %v1883, %v1879
  %v2112 = vpack.c.b16 %v1884, %v1880
  %v2113 = vpack.c.b16 %v1885, %v1881
  %v2114 = vpack.c.b16 %v1886, %v1882
  %v2115 = vpack.c.b16 %v1891, %v1887
  %v2116 = vpack.c.b16 %v1892, %v1888
  %v2117 = vpack.c.b16 %v1893, %v1889
  %v2118 = vpack.c.b16 %v1894, %v1890
  %v2119 = vpack.c.b16 %v1899, %v1895
  %v2120 = vpack.c.b16 %v1900, %v1896
  %v2121 = vpack.c.b16 %v1901, %v1897
  %v2122 = vpack.c.b16 %v1902, %v1898
  %v2123 = vpack.c.b16 %v1907, %v1903
  %v2124 = vpack.c.b16 %v1908, %v1904
  %v2125 = vpack.c.b16 %v1909, %v1905
  %v2126 = vpack.c.b16 %v1910, %v1906
  %v2127 = vpack.c.b16 %v1915, %v1911
  %v2128 = vpack.c.b16 %v1916, %v1912
  %v2129 = vpack.c.b16 %v1917, %v1913
  %v2130 = vpack.c.b16 %v1918, %v1914
  %v2131 = vpack.c.b16 %v1923, %v1919
  %v2132 = vpack.c.b16 %v1924, %v1920
  %v2133 = vpack.c.b16 %v1925, %v1921
  %v2134 = vpack.c.b16 %v1926, %v1922
  %v2135 = vpack.c.b16 %v1931, %v1927
  %v2136 = vpack.c.b16 %v1932, %v1928
  %v2137 = vpack.c.b16 %v1933, %v1929
  %v2138 = vpack.c.b16 %v1934, %v1930
  %v2139 = vpack.c.b16 %v1939, %v1935
  %v2140 = vpack.c.b16 %v1940, %v1936
  %v2141 = vpack.c.b16 %v1941, %v1937
  %v2142 = vpack.c.b16 %v1942, %v1938
  %v2143 = vpack.c.b16 %v1947, %v1943
  %v2144 = vpack.c.b16 %v1948, %v1944
  %v2145 = vpack.c.b16 %v1949, %v1945
  %v2146 = vpack.c.b16 %v1950, %v1946
  %v2147 = vpack.c.b16 %v1955, %v1951
  %v2148 = vpack.c.b16 %v1956, %v1952
  %v2149 = vpack.c.b16 %v1957, %v1953
  %v2150 = vpack.c.b16 %v1958, %v1954
  %v2151 = vpack.c.b16 %v1963, %v1959
  %v2152 = vpack.c.b16 %v1964, %v1960
  %v2153 = vpack.c.b16 %v1965, %v1961
  %v2154 = vpack.c.b16 %v1966, %v1962
  %v2155 = vpack.c.b16 %v1971, %v1967
  %v2156 = vpack.c.b16 %v1972, %v1968
  %v2157 = vpack.c.b16 %v1973, %v1969
  %v2158 = vpack.c.b16 %v1974, %v1970
  %v2159 = vpack.c.b16 %v1979, %v1975
  %v2160 = vpack.c.b16 %v1980, %v1976
  %v2161 = vpack.c.b16 %v1981, %v1977
  %v2162 = vpack.c.b16 %v1982, %v1978
  %v2163 = vpack.c.b16 %v1987, %v1983
  %v2164 = vpack.c.b16 %v1988, %v1984
  %v2165 = vpack.c.b16 %v1989, %v1985
  %v2166 = vpack.c.b16 %v1990, %v1986
  %v2167 = vpack.c.b16 %v1995, %v1991
  %v2168 = vpack.c.b16 %v1996, %v1992
  %v2169 = vpack.c.b16 %v1997, %v1993
  %v2170 = vpack.c.b16 %v1998, %v1994
  %v2171 = vpack.c.b16 %v2003, %v1999
  %v2172 = vpack.c.b16 %v2004, %v2000
  %v2173 = vpack.c.b16 %v2005, %v2001
  %v2174 = vpack.c.b16 %v2006, %v2002
  %v2175 = vpack.c.b16 %v2011, %v2007
  %v2176 = vpack.c.b16 %v2012, %v2008
  %v2177 = vpack.c.b16 %v2013, %v2009
  %v2178 = vpack.c.b16 %v2014, %v2010
  %v2179 = vpack.c.b16 %v2019, %v2015
  %v2180 = vpack.c.b16 %v2020, %v2016
  %v2181 = vpack.c.b16 %v2021, %v2017
  %v2182 = vpack.c.b16 %v2022, %v2018
  %v2183 = vpack.c.b16 %v2027, %v2023
  %v2184 = vpack.c.b16 %v2028, %v2024
  %v2185 = vpack.c.b16 %v2029, %v2025
  %v2186 = vpack.c.b16 %v2030, %v2026
  %v2187 = vpack.c.b16 %v2035, %v2031
  %v2188 = vpack.c.b16 %v2036, %v2032
  %v2189 = vpack.c.b16 %v2037, %v2033
  %v2190 = vpack.c.b16 %v2038, %v2034
  %v2191 = vpack.c.b16 %v2043, %v2039
  %v2192 = vpack.c.b16 %v2044, %v2040
  %v2193 = vpack.c.b16 %v2045, %v2041
  %v2194 = vpack.c.b16 %v2046, %v2042
  %v2195 = vpack.c.b16 %v2051, %v2047
  %v2196 = vpack.c.b16 %v2052, %v2048
  %v2197 = vpack.c.b16 %v2053, %v2049
  %v2198 = vpack.c.b16 %v2054, %v2050
  %v2199 = vpack.c.b16 %v2059, %v2055
  %v2200 = vpack.c.b16 %v2060, %v2056
  %v2201 = vpack.c.b16 %v2061, %v2057
  %v2202 = vpack.c.b16 %v2062, %v2058
  %v2203 = vpack.c.b16 %v2067, %v2063
  %v2204 = vpack.c.b16 %v2068, %v2064
  %v2205 = vpack.c.b16 %v2069, %v2065
  %v2206 = vpack.c.b16 %v2070, %v2066
  %v2207 = vpack.c.b16 %v2075, %v2071
  %v2208 = vpack.c.b16 %v2076, %v2072
  %v2209 = vpack.c.b16 %v2077, %v2073
  %v2210 = vpack.c.b16 %v2078, %v2074
  %v2211 = vpack.c.b16 %v2083, %v2079
  %v2212 = vpack.c.b16 %v2084, %v2080
  %v2213 = vpack.c.b16 %v2085, %v2081
  %v2214 = vpack.c.b16 %v2086, %v2082
  %2343 = vmatprep.subr.bf16.mxu0 %v2088
  %2344 = vmatpush1.bf16.msra.mxu0 %v2087
  %2345 = vmatprep.subr.bf16.mxu0 %v2092
  %2346 = vmatpush1.bf16.msra.mxu0 %v2091
  %2347 = vmatprep.subr.bf16.mxu0 %v2096
  %2348 = vmatpush1.bf16.msra.mxu0 %v2095
  %2349 = vmatprep.subr.bf16.mxu0 %v2100
  %2350 = vmatpush1.bf16.msra.mxu0 %v2099
  %2351 = vmatprep.subr.bf16.mxu0 %v2104
  %2352 = vmatpush1.bf16.msra.mxu0 %v2103
  %2353 = vmatprep.subr.bf16.mxu0 %v2108
  %2354 = vmatpush1.bf16.msra.mxu0 %v2107
  %2355 = vmatprep.subr.bf16.mxu0 %v2112
  %2356 = vmatpush1.bf16.msra.mxu0 %v2111
  %2357 = vmatprep.subr.bf16.mxu0 %v2116
  %2358 = vmatpush1.bf16.msra.mxu0 %v2115
  %2359 = vmatprep.subr.bf16.mxu0 %v2120
  %2360 = vmatpush1.bf16.msra.mxu0 %v2119
  %2361 = vmatprep.subr.bf16.mxu0 %v2124
  %2362 = vmatpush1.bf16.msra.mxu0 %v2123
  %2363 = vmatprep.subr.bf16.mxu0 %v2128
  %2364 = vmatpush1.bf16.msra.mxu0 %v2127
  %2365 = vmatprep.subr.bf16.mxu0 %v2132
  %2366 = vmatpush1.bf16.msra.mxu0 %v2131
  %2367 = vmatprep.subr.bf16.mxu0 %v2136
  %2368 = vmatpush1.bf16.msra.mxu0 %v2135
  %2369 = vmatprep.subr.bf16.mxu0 %v2140
  %2370 = vmatpush1.bf16.msra.mxu0 %v2139
  %2371 = vmatprep.subr.bf16.mxu0 %v2144
  %2372 = vmatpush1.bf16.msra.mxu0 %v2143
  %2373 = vmatprep.subr.bf16.mxu0 %v2148
  %2374 = vmatpush1.bf16.msra.mxu0 %v2147
  %2375 = vmatprep.mubr.bf16.mxu0 %v1520
  %2376 = vmatmul.mubr.bf16.gmra.mrb[0].mxu0 %v1519
  %v2377 = vpop.f32.mrb[0].mxu0
  %v2378 = vadd.f32 %v1686, %v2377
  %v2379 = vpop.f32.mrb[0].mxu0
  %v2380 = vadd.f32 %v1690, %v2379
  %v2381 = vpop.f32.mrb[0].mxu0
  %v2382 = vadd.f32 %v1686, %v2381
  %v2383 = vpop.f32.mrb[0].mxu0
  %v2384 = vadd.f32 %v1690, %v2383
  %2385 = vmatprep.mubr.bf16.mxu0 %v1524
  %2386 = vmatmul.mubr.bf16.gmra.mrb[0].mxu0 %v1523
  %v2387 = vpop.f32.mrb[0].mxu0
  %v2388 = vadd.f32 %v1686, %v2387
  %v2389 = vpop.f32.mrb[0].mxu0
  %v2390 = vadd.f32 %v1690, %v2389
  %v2391 = vpop.f32.mrb[0].mxu0
  %v2392 = vadd.f32 %v1686, %v2391
  %v2393 = vpop.f32.mrb[0].mxu0
  %v2394 = vadd.f32 %v1690, %v2393
  %2395 = vmatprep.mubr.bf16.mxu0 %v1528
  %2396 = vmatmul.mubr.bf16.gmra.mrb[0].mxu0 %v1527
  %v2397 = vpop.f32.mrb[0].mxu0
  %v2398 = vadd.f32 %v1686, %v2397
  %v2399 = vpop.f32.mrb[0].mxu0
  %v2400 = vadd.f32 %v1690, %v2399
  %v2401 = vpop.f32.mrb[0].mxu0
  %v2402 = vadd.f32 %v1686, %v2401
  %v2403 = vpop.f32.mrb[0].mxu0
  %v2404 = vadd.f32 %v1690, %v2403
  %2405 = vmatprep.mubr.bf16.mxu0 %v1532
  %2406 = vmatmul.mubr.bf16.gmra.mrb[0].mxu0 %v1531
  %v2407 = vpop.f32.mrb[0].mxu0
  %v2408 = vadd.f32 %v1686, %v2407
  %v2409 = vpop.f32.mrb[0].mxu0
  %v2410 = vadd.f32 %v1690, %v2409
  %v2411 = vpop.f32.mrb[0].mxu0
  %v2412 = vadd.f32 %v1686, %v2411
  %v2413 = vpop.f32.mrb[0].mxu0
  %v2414 = vadd.f32 %v1690, %v2413
  %2415 = vmatprep.mubr.bf16.mxu0 %v1536
  %2416 = vmatmul.mubr.bf16.gmra.mrb[0].mxu0 %v1535
  %v2417 = vpop.f32.mrb[0].mxu0
  %v2418 = vadd.f32 %v1686, %v2417
  %v2419 = vpop.f32.mrb[0].mxu0
  %v2420 = vadd.f32 %v1690, %v2419
  %v2421 = vpop.f32.mrb[0].mxu0
  %v2422 = vadd.f32 %v1686, %v2421
  %v2423 = vpop.f32.mrb[0].mxu0
  %v2424 = vadd.f32 %v1690, %v2423
  %2425 = vmatprep.mubr.bf16.mxu0 %v1540
  %2426 = vmatmul.mubr.bf16.gmra.mrb[0].mxu0 %v1539
  %v2427 = vpop.f32.mrb[0].mxu0
  %v2428 = vadd.f32 %v1686, %v2427
  %v2429 = vpop.f32.mrb[0].mxu0
  %v2430 = vadd.f32 %v1690, %v2429
  %v2431 = vpop.f32.mrb[0].mxu0
  %v2432 = vadd.f32 %v1686, %v2431
  %v2433 = vpop.f32.mrb[0].mxu0
  %v2434 = vadd.f32 %v1690, %v2433
  %2435 = vmatprep.mubr.bf16.mxu0 %v1544
  %2436 = vmatmul.mubr.bf16.gmra.mrb[0].mxu0 %v1543
  %v2437 = vpop.f32.mrb[0].mxu0
  %v2438 = vadd.f32 %v1686, %v2437
  %v2439 = vpop.f32.mrb[0].mxu0
  %v2440 = vadd.f32 %v1690, %v2439
  %v2441 = vpop.f32.mrb[0].mxu0
  %v2442 = vadd.f32 %v1686, %v2441
  %v2443 = vpop.f32.mrb[0].mxu0
  %v2444 = vadd.f32 %v1690, %v2443
  %2445 = vmatprep.mubr.bf16.mxu0 %v1548
  %2446 = vmatmul.mubr.bf16.gmra.mrb[0].mxu0 %v1547
  %v2447 = vpop.f32.mrb[0].mxu0
  %v2448 = vadd.f32 %v1686, %v2447
  %v2449 = vpop.f32.mrb[0].mxu0
  %v2450 = vadd.f32 %v1690, %v2449
  %v2451 = vpop.f32.mrb[0].mxu0
  %v2452 = vadd.f32 %v1686, %v2451
  %v2453 = vpop.f32.mrb[0].mxu0
  %v2454 = vadd.f32 %v1690, %v2453
  %2455 = vdwg.mxu0
  %2456 = vmatprep.subr.bf16.mxu0 %v2152
  %2457 = vmatpush1.bf16.msra.mxu0 %v2151
  %2458 = vmatprep.subr.bf16.mxu0 %v2156
  %2459 = vmatpush1.bf16.msra.mxu0 %v2155
  %2460 = vmatprep.subr.bf16.mxu0 %v2160
  %2461 = vmatpush1.bf16.msra.mxu0 %v2159
  %2462 = vmatprep.subr.bf16.mxu0 %v2164
  %2463 = vmatpush1.bf16.msra.mxu0 %v2163
  %2464 = vmatprep.subr.bf16.mxu0 %v2168
  %2465 = vmatpush1.bf16.msra.mxu0 %v2167
  %2466 = vmatprep.subr.bf16.mxu0 %v2172
  %2467 = vmatpush1.bf16.msra.mxu0 %v2171
  %2468 = vmatprep.subr.bf16.mxu0 %v2176
  %2469 = vmatpush1.bf16.msra.mxu0 %v2175
  %2470 = vmatprep.subr.bf16.mxu0 %v2180
  %2471 = vmatpush1.bf16.msra.mxu0 %v2179
  %2472 = vmatprep.subr.bf16.mxu0 %v2184
  %2473 = vmatpush1.bf16.msra.mxu0 %v2183
  %2474 = vmatprep.subr.bf16.mxu0 %v2188
  %2475 = vmatpush1.bf16.msra.mxu0 %v2187
  %2476 = vmatprep.subr.bf16.mxu0 %v2192
  %2477 = vmatpush1.bf16.msra.mxu0 %v2191
  %2478 = vmatprep.subr.bf16.mxu0 %v2196
  %2479 = vmatpush1.bf16.msra.mxu0 %v2195
  %2480 = vmatprep.subr.bf16.mxu0 %v2200
  %2481 = vmatpush1.bf16.msra.mxu0 %v2199
  %2482 = vmatprep.subr.bf16.mxu0 %v2204
  %2483 = vmatpush1.bf16.msra.mxu0 %v2203
  %2484 = vmatprep.subr.bf16.mxu0 %v2208
  %2485 = vmatpush1.bf16.msra.mxu0 %v2207
  %2486 = vmatprep.subr.bf16.mxu0 %v2212
  %2487 = vmatpush1.bf16.msra.mxu0 %v2211
  %2488 = vmatprep.mubr.bf16.mxu0 %v1522
  %2489 = vmatmul.mubr.bf16.gmra.mrb[0].mxu0 %v1521
  %v2490 = vpop.f32.mrb[0].mxu0
  %v2491 = vadd.f32 %v2378, %v2490
  %v2492 = vpop.f32.mrb[0].mxu0
  %v2493 = vadd.f32 %v2380, %v2492
  %v2494 = vpop.f32.mrb[0].mxu0
  %v2495 = vadd.f32 %v2382, %v2494
  %v2496 = vpop.f32.mrb[0].mxu0
  %v2497 = vadd.f32 %v2384, %v2496
  %2498 = vmatprep.mubr.bf16.mxu0 %v1526
  %2499 = vmatmul.mubr.bf16.gmra.mrb[0].mxu0 %v1525
  %v2500 = vpop.f32.mrb[0].mxu0
  %v2501 = vadd.f32 %v2388, %v2500
  %v2502 = vpop.f32.mrb[0].mxu0
  %v2503 = vadd.f32 %v2390, %v2502
  %v2504 = vpop.f32.mrb[0].mxu0
  %v2505 = vadd.f32 %v2392, %v2504
  %v2506 = vpop.f32.mrb[0].mxu0
  %v2507 = vadd.f32 %v2394, %v2506
  %2508 = vmatprep.mubr.bf16.mxu0 %v1530
  %2509 = vmatmul.mubr.bf16.gmra.mrb[0].mxu0 %v1529
  %v2510 = vpop.f32.mrb[0].mxu0
  %v2511 = vadd.f32 %v2398, %v2510
  %v2512 = vpop.f32.mrb[0].mxu0
  %v2513 = vadd.f32 %v2400, %v2512
  %v2514 = vpop.f32.mrb[0].mxu0
  %v2515 = vadd.f32 %v2402, %v2514
  %v2516 = vpop.f32.mrb[0].mxu0
  %v2517 = vadd.f32 %v2404, %v2516
  %2518 = vmatprep.mubr.bf16.mxu0 %v1534
  %2519 = vmatmul.mubr.bf16.gmra.mrb[0].mxu0 %v1533
  %v2520 = vpop.f32.mrb[0].mxu0
  %v2521 = vadd.f32 %v2408, %v2520
  %v2522 = vpop.f32.mrb[0].mxu0
  %v2523 = vadd.f32 %v2410, %v2522
  %v2524 = vpop.f32.mrb[0].mxu0
  %v2525 = vadd.f32 %v2412, %v2524
  %v2526 = vpop.f32.mrb[0].mxu0
  %v2527 = vadd.f32 %v2414, %v2526
  %2528 = vmatprep.mubr.bf16.mxu0 %v1538
  %2529 = vmatmul.mubr.bf16.gmra.mrb[0].mxu0 %v1537
  %v2530 = vpop.f32.mrb[0].mxu0
  %v2531 = vadd.f32 %v2418, %v2530
  %v2532 = vpop.f32.mrb[0].mxu0
  %v2533 = vadd.f32 %v2420, %v2532
  %v2534 = vpop.f32.mrb[0].mxu0
  %v2535 = vadd.f32 %v2422, %v2534
  %v2536 = vpop.f32.mrb[0].mxu0
  %v2537 = vadd.f32 %v2424, %v2536
  %2538 = vmatprep.mubr.bf16.mxu0 %v1542
  %2539 = vmatmul.mubr.bf16.gmra.mrb[0].mxu0 %v1541
  %v2540 = vpop.f32.mrb[0].mxu0
  %v2541 = vadd.f32 %v2428, %v2540
  %v2542 = vpop.f32.mrb[0].mxu0
  %v2543 = vadd.f32 %v2430, %v2542
  %v2544 = vpop.f32.mrb[0].mxu0
  %v2545 = vadd.f32 %v2432, %v2544
  %v2546 = vpop.f32.mrb[0].mxu0
  %v2547 = vadd.f32 %v2434, %v2546
  %2548 = vmatprep.mubr.bf16.mxu0 %v1546
  %2549 = vmatmul.mubr.bf16.gmra.mrb[0].mxu0 %v1545
  %v2550 = vpop.f32.mrb[0].mxu0
  %v2551 = vadd.f32 %v2438, %v2550
  %v2552 = vpop.f32.mrb[0].mxu0
  %v2553 = vadd.f32 %v2440, %v2552
  %v2554 = vpop.f32.mrb[0].mxu0
  %v2555 = vadd.f32 %v2442, %v2554
  %v2556 = vpop.f32.mrb[0].mxu0
  %v2557 = vadd.f32 %v2444, %v2556
  %2558 = vmatprep.mubr.bf16.mxu0 %v1550
  %2559 = vmatmul.mubr.bf16.gmra.mrb[0].mxu0 %v1549
  %v2560 = vpop.f32.mrb[0].mxu0
  %v2561 = vadd.f32 %v2448, %v2560
  %v2562 = vpop.f32.mrb[0].mxu0
  %v2563 = vadd.f32 %v2450, %v2562
  %v2564 = vpop.f32.mrb[0].mxu0
  %v2565 = vadd.f32 %v2452, %v2564
  %v2566 = vpop.f32.mrb[0].mxu0
  %v2567 = vadd.f32 %v2454, %v2566
  %2568 = vdwg.mxu0
  %2569 = vmatprep.subr.bf16.mxu0 %v2090
  %2570 = vmatpush1.bf16.msra.mxu0 %v2089
  %2571 = vmatprep.subr.bf16.mxu0 %v2094
  %2572 = vmatpush1.bf16.msra.mxu0 %v2093
  %2573 = vmatprep.subr.bf16.mxu0 %v2098
  %2574 = vmatpush1.bf16.msra.mxu0 %v2097
  %2575 = vmatprep.subr.bf16.mxu0 %v2102
  %2576 = vmatpush1.bf16.msra.mxu0 %v2101
  %2577 = vmatprep.subr.bf16.mxu0 %v2106
  %2578 = vmatpush1.bf16.msra.mxu0 %v2105
  %2579 = vmatprep.subr.bf16.mxu0 %v2110
  %2580 = vmatpush1.bf16.msra.mxu0 %v2109
  %2581 = vmatprep.subr.bf16.mxu0 %v2114
  %2582 = vmatpush1.bf16.msra.mxu0 %v2113
  %2583 = vmatprep.subr.bf16.mxu0 %v2118
  %2584 = vmatpush1.bf16.msra.mxu0 %v2117
  %2585 = vmatprep.subr.bf16.mxu0 %v2122
  %2586 = vmatpush1.bf16.msra.mxu0 %v2121
  %2587 = vmatprep.subr.bf16.mxu0 %v2126
  %2588 = vmatpush1.bf16.msra.mxu0 %v2125
  %2589 = vmatprep.subr.bf16.mxu0 %v2130
  %2590 = vmatpush1.bf16.msra.mxu0 %v2129
  %2591 = vmatprep.subr.bf16.mxu0 %v2134
  %2592 = vmatpush1.bf16.msra.mxu0 %v2133
  %2593 = vmatprep.subr.bf16.mxu0 %v2138
  %2594 = vmatpush1.bf16.msra.mxu0 %v2137
  %2595 = vmatprep.subr.bf16.mxu0 %v2142
  %2596 = vmatpush1.bf16.msra.mxu0 %v2141
  %2597 = vmatprep.subr.bf16.mxu0 %v2146
  %2598 = vmatpush1.bf16.msra.mxu0 %v2145
  %2599 = vmatprep.subr.bf16.mxu0 %v2150
  %2600 = vmatpush1.bf16.msra.mxu0 %v2149
  %2601 = vmatprep.mubr.bf16.mxu0 %v1520
  %2602 = vmatmul.mubr.bf16.gmra.mrb[0].mxu0 %v1519
  %v2603 = vpop.f32.mrb[0].mxu0
  %v2604 = vadd.f32 %v1694, %v2603
  %v2605 = vpop.f32.mrb[0].mxu0
  %v2606 = vadd.f32 %v1698, %v2605
  %v2607 = vpop.f32.mrb[0].mxu0
  %v2608 = vadd.f32 %v1694, %v2607
  %v2609 = vpop.f32.mrb[0].mxu0
  %v2610 = vadd.f32 %v1698, %v2609
  %2611 = vmatprep.mubr.bf16.mxu0 %v1524
  %2612 = vmatmul.mubr.bf16.gmra.mrb[0].mxu0 %v1523
  %v2613 = vpop.f32.mrb[0].mxu0
  %v2614 = vadd.f32 %v1694, %v2613
  %v2615 = vpop.f32.mrb[0].mxu0
  %v2616 = vadd.f32 %v1698, %v2615
  %v2617 = vpop.f32.mrb[0].mxu0
  %v2618 = vadd.f32 %v1694, %v2617
  %v2619 = vpop.f32.mrb[0].mxu0
  %v2620 = vadd.f32 %v1698, %v2619
  %2621 = vmatprep.mubr.bf16.mxu0 %v1528
  %2622 = vmatmul.mubr.bf16.gmra.mrb[0].mxu0 %v1527
  %v2623 = vpop.f32.mrb[0].mxu0
  %v2624 = vadd.f32 %v1694, %v2623
  %v2625 = vpop.f32.mrb[0].mxu0
  %v2626 = vadd.f32 %v1698, %v2625
  %v2627 = vpop.f32.mrb[0].mxu0
  %v2628 = vadd.f32 %v1694, %v2627
  %v2629 = vpop.f32.mrb[0].mxu0
  %v2630 = vadd.f32 %v1698, %v2629
  %2631 = vmatprep.mubr.bf16.mxu0 %v1532
  %2632 = vmatmul.mubr.bf16.gmra.mrb[0].mxu0 %v1531
  %v2633 = vpop.f32.mrb[0].mxu0
  %v2634 = vadd.f32 %v1694, %v2633
  %v2635 = vpop.f32.mrb[0].mxu0
  %v2636 = vadd.f32 %v1698, %v2635
  %v2637 = vpop.f32.mrb[0].mxu0
  %v2638 = vadd.f32 %v1694, %v2637
  %v2639 = vpop.f32.mrb[0].mxu0
  %v2640 = vadd.f32 %v1698, %v2639
  %2641 = vmatprep.mubr.bf16.mxu0 %v1536
  %2642 = vmatmul.mubr.bf16.gmra.mrb[0].mxu0 %v1535
  %v2643 = vpop.f32.mrb[0].mxu0
  %v2644 = vadd.f32 %v1694, %v2643
  %v2645 = vpop.f32.mrb[0].mxu0
  %v2646 = vadd.f32 %v1698, %v2645
  %v2647 = vpop.f32.mrb[0].mxu0
  %v2648 = vadd.f32 %v1694, %v2647
  %v2649 = vpop.f32.mrb[0].mxu0
  %v2650 = vadd.f32 %v1698, %v2649
  %2651 = vmatprep.mubr.bf16.mxu0 %v1540
  %2652 = vmatmul.mubr.bf16.gmra.mrb[0].mxu0 %v1539
  %v2653 = vpop.f32.mrb[0].mxu0
  %v2654 = vadd.f32 %v1694, %v2653
  %v2655 = vpop.f32.mrb[0].mxu0
  %v2656 = vadd.f32 %v1698, %v2655
  %v2657 = vpop.f32.mrb[0].mxu0
  %v2658 = vadd.f32 %v1694, %v2657
  %v2659 = vpop.f32.mrb[0].mxu0
  %v2660 = vadd.f32 %v1698, %v2659
  %2661 = vmatprep.mubr.bf16.mxu0 %v1544
  %2662 = vmatmul.mubr.bf16.gmra.mrb[0].mxu0 %v1543
  %v2663 = vpop.f32.mrb[0].mxu0
  %v2664 = vadd.f32 %v1694, %v2663
  %v2665 = vpop.f32.mrb[0].mxu0
  %v2666 = vadd.f32 %v1698, %v2665
  %v2667 = vpop.f32.mrb[0].mxu0
  %v2668 = vadd.f32 %v1694, %v2667
  %v2669 = vpop.f32.mrb[0].mxu0
  %v2670 = vadd.f32 %v1698, %v2669
  %2671 = vmatprep.mubr.bf16.mxu0 %v1548
  %2672 = vmatmul.mubr.bf16.gmra.mrb[0].mxu0 %v1547
  %v2673 = vpop.f32.mrb[0].mxu0
  %v2674 = vadd.f32 %v1694, %v2673
  %v2675 = vpop.f32.mrb[0].mxu0
  %v2676 = vadd.f32 %v1698, %v2675
  %v2677 = vpop.f32.mrb[0].mxu0
  %v2678 = vadd.f32 %v1694, %v2677
  %v2679 = vpop.f32.mrb[0].mxu0
  %v2680 = vadd.f32 %v1698, %v2679
  %2681 = vdwg.mxu0
  %2682 = vmatprep.subr.bf16.mxu0 %v2154
  %2683 = vmatpush1.bf16.msra.mxu0 %v2153
  %2684 = vmatprep.subr.bf16.mxu0 %v2158
  %2685 = vmatpush1.bf16.msra.mxu0 %v2157
  %2686 = vmatprep.subr.bf16.mxu0 %v2162
  %2687 = vmatpush1.bf16.msra.mxu0 %v2161
  %2688 = vmatprep.subr.bf16.mxu0 %v2166
  %2689 = vmatpush1.bf16.msra.mxu0 %v2165
  %2690 = vmatprep.subr.bf16.mxu0 %v2170
  %2691 = vmatpush1.bf16.msra.mxu0 %v2169
  %2692 = vmatprep.subr.bf16.mxu0 %v2174
  %2693 = vmatpush1.bf16.msra.mxu0 %v2173
  %2694 = vmatprep.subr.bf16.mxu0 %v2178
  %2695 = vmatpush1.bf16.msra.mxu0 %v2177
  %2696 = vmatprep.subr.bf16.mxu0 %v2182
  %2697 = vmatpush1.bf16.msra.mxu0 %v2181
  %2698 = vmatprep.subr.bf16.mxu0 %v2186
  %2699 = vmatpush1.bf16.msra.mxu0 %v2185
  %2700 = vmatprep.subr.bf16.mxu0 %v2190
  %2701 = vmatpush1.bf16.msra.mxu0 %v2189
  %2702 = vmatprep.subr.bf16.mxu0 %v2194
  %2703 = vmatpush1.bf16.msra.mxu0 %v2193
  %2704 = vmatprep.subr.bf16.mxu0 %v2198
  %2705 = vmatpush1.bf16.msra.mxu0 %v2197
  %2706 = vmatprep.subr.bf16.mxu0 %v2202
  %2707 = vmatpush1.bf16.msra.mxu0 %v2201
  %2708 = vmatprep.subr.bf16.mxu0 %v2206
  %2709 = vmatpush1.bf16.msra.mxu0 %v2205
  %2710 = vmatprep.subr.bf16.mxu0 %v2210
  %2711 = vmatpush1.bf16.msra.mxu0 %v2209
  %2712 = vmatprep.subr.bf16.mxu0 %v2214
  %2713 = vmatpush1.bf16.msra.mxu0 %v2213
  %2714 = vmatprep.mubr.bf16.mxu0 %v1522
  %2715 = vmatmul.mubr.bf16.gmra.mrb[0].mxu0 %v1521
  %v2716 = vpop.f32.mrb[0].mxu0
  %v2717 = vadd.f32 %v2604, %v2716
  %v2718 = vpop.f32.mrb[0].mxu0
  %v2719 = vadd.f32 %v2606, %v2718
  %v2720 = vpop.f32.mrb[0].mxu0
  %v2721 = vadd.f32 %v2608, %v2720
  %v2722 = vpop.f32.mrb[0].mxu0
  %v2723 = vadd.f32 %v2610, %v2722
  %2724 = vmatprep.mubr.bf16.mxu0 %v1526
  %2725 = vmatmul.mubr.bf16.gmra.mrb[0].mxu0 %v1525
  %v2726 = vpop.f32.mrb[0].mxu0
  %v2727 = vadd.f32 %v2614, %v2726
  %v2728 = vpop.f32.mrb[0].mxu0
  %v2729 = vadd.f32 %v2616, %v2728
  %v2730 = vpop.f32.mrb[0].mxu0
  %v2731 = vadd.f32 %v2618, %v2730
  %v2732 = vpop.f32.mrb[0].mxu0
  %v2733 = vadd.f32 %v2620, %v2732
  %2734 = vmatprep.mubr.bf16.mxu0 %v1530
  %2735 = vmatmul.mubr.bf16.gmra.mrb[0].mxu0 %v1529
  %v2736 = vpop.f32.mrb[0].mxu0
  %v2737 = vadd.f32 %v2624, %v2736
  %v2738 = vpop.f32.mrb[0].mxu0
  %v2739 = vadd.f32 %v2626, %v2738
  %v2740 = vpop.f32.mrb[0].mxu0
  %v2741 = vadd.f32 %v2628, %v2740
  %v2742 = vpop.f32.mrb[0].mxu0
  %v2743 = vadd.f32 %v2630, %v2742
  %2744 = vmatprep.mubr.bf16.mxu0 %v1534
  %2745 = vmatmul.mubr.bf16.gmra.mrb[0].mxu0 %v1533
  %v2746 = vpop.f32.mrb[0].mxu0
  %v2747 = vadd.f32 %v2634, %v2746
  %v2748 = vpop.f32.mrb[0].mxu0
  %v2749 = vadd.f32 %v2636, %v2748
  %v2750 = vpop.f32.mrb[0].mxu0
  %v2751 = vadd.f32 %v2638, %v2750
  %v2752 = vpop.f32.mrb[0].mxu0
  %v2753 = vadd.f32 %v2640, %v2752
  %2754 = vmatprep.mubr.bf16.mxu0 %v1538
  %2755 = vmatmul.mubr.bf16.gmra.mrb[0].mxu0 %v1537
  %v2756 = vpop.f32.mrb[0].mxu0
  %v2757 = vadd.f32 %v2644, %v2756
  %v2758 = vpop.f32.mrb[0].mxu0
  %v2759 = vadd.f32 %v2646, %v2758
  %v2760 = vpop.f32.mrb[0].mxu0
  %v2761 = vadd.f32 %v2648, %v2760
  %v2762 = vpop.f32.mrb[0].mxu0
  %v2763 = vadd.f32 %v2650, %v2762
  %2764 = vmatprep.mubr.bf16.mxu0 %v1542
  %2765 = vmatmul.mubr.bf16.gmra.mrb[0].mxu0 %v1541
  %v2766 = vpop.f32.mrb[0].mxu0
  %v2767 = vadd.f32 %v2654, %v2766
  %v2768 = vpop.f32.mrb[0].mxu0
  %v2769 = vadd.f32 %v2656, %v2768
  %v2770 = vpop.f32.mrb[0].mxu0
  %v2771 = vadd.f32 %v2658, %v2770
  %v2772 = vpop.f32.mrb[0].mxu0
  %v2773 = vadd.f32 %v2660, %v2772
  %2774 = vmatprep.mubr.bf16.mxu0 %v1546
  %2775 = vmatmul.mubr.bf16.gmra.mrb[0].mxu0 %v1545
  %v2776 = vpop.f32.mrb[0].mxu0
  %v2777 = vadd.f32 %v2664, %v2776
  %v2778 = vpop.f32.mrb[0].mxu0
  %v2779 = vadd.f32 %v2666, %v2778
  %v2780 = vpop.f32.mrb[0].mxu0
  %v2781 = vadd.f32 %v2668, %v2780
  %v2782 = vpop.f32.mrb[0].mxu0
  %v2783 = vadd.f32 %v2670, %v2782
  %2784 = vmatprep.mubr.bf16.mxu0 %v1550
  %2785 = vmatmul.mubr.bf16.gmra.mrb[0].mxu0 %v1549
  %v2786 = vpop.f32.mrb[0].mxu0
  %v2787 = vadd.f32 %v2674, %v2786
  %v2788 = vpop.f32.mrb[0].mxu0
  %v2789 = vadd.f32 %v2676, %v2788
  %v2790 = vpop.f32.mrb[0].mxu0
  %v2791 = vadd.f32 %v2678, %v2790
  %v2792 = vpop.f32.mrb[0].mxu0
  %v2793 = vadd.f32 %v2680, %v2792
  %2794 = vdwg.mxu0
  %v2795 = vmax.f32 %v2491, 0.0
  %v2796 = vmax.f32 %v2493, 0.0
  %v2797 = vmax.f32 %v2717, 0.0
  %v2798 = vmax.f32 %v2719, 0.0
  %v2799 = vmax.f32 %v2495, 0.0
  %v2800 = vmax.f32 %v2497, 0.0
  %v2801 = vmax.f32 %v2721, 0.0
  %v2802 = vmax.f32 %v2723, 0.0
  %v2803 = vmax.f32 %v2501, 0.0
  %v2804 = vmax.f32 %v2503, 0.0
  %v2805 = vmax.f32 %v2727, 0.0
  %v2806 = vmax.f32 %v2729, 0.0
  %v2807 = vmax.f32 %v2505, 0.0
  %v2808 = vmax.f32 %v2507, 0.0
  %v2809 = vmax.f32 %v2731, 0.0
  %v2810 = vmax.f32 %v2733, 0.0
  %v2811 = vmax.f32 %v2511, 0.0
  %v2812 = vmax.f32 %v2513, 0.0
  %v2813 = vmax.f32 %v2737, 0.0
  %v2814 = vmax.f32 %v2739, 0.0
  %v2815 = vmax.f32 %v2515, 0.0
  %v2816 = vmax.f32 %v2517, 0.0
  %v2817 = vmax.f32 %v2741, 0.0
  %v2818 = vmax.f32 %v2743, 0.0
  %v2819 = vmax.f32 %v2521, 0.0
  %v2820 = vmax.f32 %v2523, 0.0
  %v2821 = vmax.f32 %v2747, 0.0
  %v2822 = vmax.f32 %v2749, 0.0
  %v2823 = vmax.f32 %v2525, 0.0
  %v2824 = vmax.f32 %v2527, 0.0
  %v2825 = vmax.f32 %v2751, 0.0
  %v2826 = vmax.f32 %v2753, 0.0
  %v2827 = vmax.f32 %v2531, 0.0
  %v2828 = vmax.f32 %v2533, 0.0
  %v2829 = vmax.f32 %v2757, 0.0
  %v2830 = vmax.f32 %v2759, 0.0
  %v2831 = vmax.f32 %v2535, 0.0
  %v2832 = vmax.f32 %v2537, 0.0
  %v2833 = vmax.f32 %v2761, 0.0
  %v2834 = vmax.f32 %v2763, 0.0
  %v2835 = vmax.f32 %v2541, 0.0
  %v2836 = vmax.f32 %v2543, 0.0
  %v2837 = vmax.f32 %v2767, 0.0
  %v2838 = vmax.f32 %v2769, 0.0
  %v2839 = vmax.f32 %v2545, 0.0
  %v2840 = vmax.f32 %v2547, 0.0
  %v2841 = vmax.f32 %v2771, 0.0
  %v2842 = vmax.f32 %v2773, 0.0
  %v2843 = vmax.f32 %v2551, 0.0
  %v2844 = vmax.f32 %v2553, 0.0
  %v2845 = vmax.f32 %v2777, 0.0
  %v2846 = vmax.f32 %v2779, 0.0
  %v2847 = vmax.f32 %v2555, 0.0
  %v2848 = vmax.f32 %v2557, 0.0
  %v2849 = vmax.f32 %v2781, 0.0
  %v2850 = vmax.f32 %v2783, 0.0
  %v2851 = vmax.f32 %v2561, 0.0
  %v2852 = vmax.f32 %v2563, 0.0
  %v2853 = vmax.f32 %v2787, 0.0
  %v2854 = vmax.f32 %v2789, 0.0
  %v2855 = vmax.f32 %v2565, 0.0
  %v2856 = vmax.f32 %v2567, 0.0
  %v2857 = vmax.f32 %v2791, 0.0
  %v2858 = vmax.f32 %v2793, 0.0
  %v2859 = vpack.c.bf16 %v2799, %v2795
  %v2860 = vpack.c.bf16 %v2800, %v2796
  %v2861 = vpack.c.bf16 %v2801, %v2797
  %v2862 = vpack.c.bf16 %v2802, %v2798
  %v2863 = vpack.c.bf16 %v2807, %v2803
  %v2864 = vpack.c.bf16 %v2808, %v2804
  %v2865 = vpack.c.bf16 %v2809, %v2805
  %v2866 = vpack.c.bf16 %v2810, %v2806
  %v2867 = vpack.c.bf16 %v2815, %v2811
  %v2868 = vpack.c.bf16 %v2816, %v2812
  %v2869 = vpack.c.bf16 %v2817, %v2813
  %v2870 = vpack.c.bf16 %v2818, %v2814
  %v2871 = vpack.c.bf16 %v2823, %v2819
  %v2872 = vpack.c.bf16 %v2824, %v2820
  %v2873 = vpack.c.bf16 %v2825, %v2821
  %v2874 = vpack.c.bf16 %v2826, %v2822
  %v2875 = vpack.c.bf16 %v2831, %v2827
  %v2876 = vpack.c.bf16 %v2832, %v2828
  %v2877 = vpack.c.bf16 %v2833, %v2829
  %v2878 = vpack.c.bf16 %v2834, %v2830
  %v2879 = vpack.c.bf16 %v2839, %v2835
  %v2880 = vpack.c.bf16 %v2840, %v2836
  %v2881 = vpack.c.bf16 %v2841, %v2837
  %v2882 = vpack.c.bf16 %v2842, %v2838
  %v2883 = vpack.c.bf16 %v2847, %v2843
  %v2884 = vpack.c.bf16 %v2848, %v2844
  %v2885 = vpack.c.bf16 %v2849, %v2845
  %v2886 = vpack.c.bf16 %v2850, %v2846
  %v2887 = vpack.c.bf16 %v2855, %v2851
  %v2888 = vpack.c.bf16 %v2856, %v2852
  %v2889 = vpack.c.bf16 %v2857, %v2853
  %v2890 = vpack.c.bf16 %v2858, %v2854
  %v2891 = vld [vmem:[%s3] sm:$0xf]
  %v2892 = vld [vmem:[%s3 + $0x4] sm:$0xf]
  %v2893 = vld [vmem:[%s3 + $0x8] sm:$0xf]
  %v2894 = vld [vmem:[%s3 + $0xc] sm:$0xf]
  %v2895 = vld [vmem:[%s3 + $0x10] sm:$0xf]
  %v2896 = vld [vmem:[%s3 + $0x14] sm:$0xf]
  %v2897 = vld [vmem:[%s3 + $0x18] sm:$0xf]
  %v2898 = vld [vmem:[%s3 + $0x1c] sm:$0xf]
  %v2899 = vld [vmem:[%s3 + $0x20] sm:$0xf]
  %v2900 = vld [vmem:[%s3 + $0x24] sm:$0xf]
  %v2901 = vld [vmem:[%s3 + $0x28] sm:$0xf]
  %v2902 = vld [vmem:[%s3 + $0x2c] sm:$0xf]
  %v2903 = vld [vmem:[%s3 + $0x30] sm:$0xf]
  %v2904 = vld [vmem:[%s3 + $0x34] sm:$0xf]
  %v2905 = vld [vmem:[%s3 + $0x38] sm:$0xf]
  %v2906 = vld [vmem:[%s3 + $0x3c] sm:$0xf]
  %v2907 = vld [vmem:[%s3 + $0x40] sm:$0xf]
  %v2908 = vld [vmem:[%s3 + $0x44] sm:$0xf]
  %v2909 = vld [vmem:[%s3 + $0x48] sm:$0xf]
  %v2910 = vld [vmem:[%s3 + $0x4c] sm:$0xf]
  %v2911 = vld [vmem:[%s3 + $0x50] sm:$0xf]
  %v2912 = vld [vmem:[%s3 + $0x54] sm:$0xf]
  %v2913 = vld [vmem:[%s3 + $0x58] sm:$0xf]
  %v2914 = vld [vmem:[%s3 + $0x5c] sm:$0xf]
  %v2915 = vld [vmem:[%s3 + $0x60] sm:$0xf]
  %v2916 = vld [vmem:[%s3 + $0x64] sm:$0xf]
  %v2917 = vld [vmem:[%s3 + $0x68] sm:$0xf]
  %v2918 = vld [vmem:[%s3 + $0x6c] sm:$0xf]
  %v2919 = vld [vmem:[%s3 + $0x70] sm:$0xf]
  %v2920 = vld [vmem:[%s3 + $0x74] sm:$0xf]
  %v2921 = vld [vmem:[%s3 + $0x78] sm:$0xf]
  %v2922 = vld [vmem:[%s3 + $0x7c] sm:$0xf]
  %v2923 = vld [vmem:[%s3 + $0x80] sm:$0xf]
  %v2924 = vld [vmem:[%s3 + $0x84] sm:$0xf]
  %v2925 = vld [vmem:[%s3 + $0x88] sm:$0xf]
  %v2926 = vld [vmem:[%s3 + $0x8c] sm:$0xf]
  %v2927 = vld [vmem:[%s3 + $0x90] sm:$0xf]
  %v2928 = vld [vmem:[%s3 + $0x94] sm:$0xf]
  %v2929 = vld [vmem:[%s3 + $0x98] sm:$0xf]
  %v2930 = vld [vmem:[%s3 + $0x9c] sm:$0xf]
  %v2931 = vld [vmem:[%s3 + $0xa0] sm:$0xf]
  %v2932 = vld [vmem:[%s3 + $0xa4] sm:$0xf]
  %v2933 = vld [vmem:[%s3 + $0xa8] sm:$0xf]
  %v2934 = vld [vmem:[%s3 + $0xac] sm:$0xf]
  %v2935 = vld [vmem:[%s3 + $0xb0] sm:$0xf]
  %v2936 = vld [vmem:[%s3 + $0xb4] sm:$0xf]
  %v2937 = vld [vmem:[%s3 + $0xb8] sm:$0xf]
  %v2938 = vld [vmem:[%s3 + $0xbc] sm:$0xf]
  %v2939 = vld [vmem:[%s3 + $0xc0] sm:$0xf]
  %v2940 = vld [vmem:[%s3 + $0xc4] sm:$0xf]
  %v2941 = vld [vmem:[%s3 + $0xc8] sm:$0xf]
  %v2942 = vld [vmem:[%s3 + $0xcc] sm:$0xf]
  %v2943 = vld [vmem:[%s3 + $0xd0] sm:$0xf]
  %v2944 = vld [vmem:[%s3 + $0xd4] sm:$0xf]
  %v2945 = vld [vmem:[%s3 + $0xd8] sm:$0xf]
  %v2946 = vld [vmem:[%s3 + $0xdc] sm:$0xf]
  %v2947 = vld [vmem:[%s3 + $0xe0] sm:$0xf]
  %v2948 = vld [vmem:[%s3 + $0xe4] sm:$0xf]
  %v2949 = vld [vmem:[%s3 + $0xe8] sm:$0xf]
  %v2950 = vld [vmem:[%s3 + $0xec] sm:$0xf]
  %v2951 = vld [vmem:[%s3 + $0xf0] sm:$0xf]
  %v2952 = vld [vmem:[%s3 + $0xf4] sm:$0xf]
  %v2953 = vld [vmem:[%s3 + $0xf8] sm:$0xf]
  %v2954 = vld [vmem:[%s3 + $0xfc] sm:$0xf]
  %v2955 = vld [vmem:[%s4] sm:$0x1]
  %v2957 = vlaneseq
  %v2958 = vshrl.u32 %v2957, 7
  %v2959 = vsub.s32 0, %v2958
  %v2960 = vrot.slane %v2955, %v2959
  %v3026 = vunpack.c.l.b16 %v2891
  %v3027 = vunpack.c.l.b16 %v2892
  %v3028 = vunpack.c.l.b16 %v2893
  %v3029 = vunpack.c.l.b16 %v2894
  %v3030 = vunpack.c.l.b16 %v2895
  %v3031 = vunpack.c.l.b16 %v2896
  %v3032 = vunpack.c.l.b16 %v2897
  %v3033 = vunpack.c.l.b16 %v2898
  %v3034 = vunpack.c.l.b16 %v2899
  %v3035 = vunpack.c.l.b16 %v2900
  %v3036 = vunpack.c.l.b16 %v2901
  %v3037 = vunpack.c.l.b16 %v2902
  %v3038 = vunpack.c.l.b16 %v2903
  %v3039 = vunpack.c.l.b16 %v2904
  %v3040 = vunpack.c.l.b16 %v2905
  %v3041 = vunpack.c.l.b16 %v2906
  %v3042 = vunpack.c.l.b16 %v2907
  %v3043 = vunpack.c.l.b16 %v2908
  %v3044 = vunpack.c.l.b16 %v2909
  %v3045 = vunpack.c.l.b16 %v2910
  %v3046 = vunpack.c.l.b16 %v2911
  %v3047 = vunpack.c.l.b16 %v2912
  %v3048 = vunpack.c.l.b16 %v2913
  %v3049 = vunpack.c.l.b16 %v2914
  %v3050 = vunpack.c.l.b16 %v2915
  %v3051 = vunpack.c.l.b16 %v2916
  %v3052 = vunpack.c.l.b16 %v2917
  %v3053 = vunpack.c.l.b16 %v2918
  %v3054 = vunpack.c.l.b16 %v2919
  %v3055 = vunpack.c.l.b16 %v2920
  %v3056 = vunpack.c.l.b16 %v2921
  %v3057 = vunpack.c.l.b16 %v2922
  %v3058 = vunpack.c.l.b16 %v2923
  %v3059 = vunpack.c.l.b16 %v2924
  %v3060 = vunpack.c.l.b16 %v2925
  %v3061 = vunpack.c.l.b16 %v2926
  %v3062 = vunpack.c.l.b16 %v2927
  %v3063 = vunpack.c.l.b16 %v2928
  %v3064 = vunpack.c.l.b16 %v2929
  %v3065 = vunpack.c.l.b16 %v2930
  %v3066 = vunpack.c.l.b16 %v2931
  %v3067 = vunpack.c.l.b16 %v2932
  %v3068 = vunpack.c.l.b16 %v2933
  %v3069 = vunpack.c.l.b16 %v2934
  %v3070 = vunpack.c.l.b16 %v2935
  %v3071 = vunpack.c.l.b16 %v2936
  %v3072 = vunpack.c.l.b16 %v2937
  %v3073 = vunpack.c.l.b16 %v2938
  %v3074 = vunpack.c.l.b16 %v2939
  %v3075 = vunpack.c.l.b16 %v2940
  %v3076 = vunpack.c.l.b16 %v2941
  %v3077 = vunpack.c.l.b16 %v2942
  %v3078 = vunpack.c.l.b16 %v2943
  %v3079 = vunpack.c.l.b16 %v2944
  %v3080 = vunpack.c.l.b16 %v2945
  %v3081 = vunpack.c.l.b16 %v2946
  %v3082 = vunpack.c.l.b16 %v2947
  %v3083 = vunpack.c.l.b16 %v2948
  %v3084 = vunpack.c.l.b16 %v2949
  %v3085 = vunpack.c.l.b16 %v2950
  %v3086 = vunpack.c.l.b16 %v2951
  %v3087 = vunpack.c.l.b16 %v2952
  %v3088 = vunpack.c.l.b16 %v2953
  %v3089 = vunpack.c.l.b16 %v2954
  %v3090 = vpack.c.b16 %v3027, %v3026
  %v3091 = vpack.c.b16 %v3029, %v3028
  %v3092 = vpack.c.b16 %v3031, %v3030
  %v3093 = vpack.c.b16 %v3033, %v3032
  %v3094 = vpack.c.b16 %v3035, %v3034
  %v3095 = vpack.c.b16 %v3037, %v3036
  %v3096 = vpack.c.b16 %v3039, %v3038
  %v3097 = vpack.c.b16 %v3041, %v3040
  %v3098 = vpack.c.b16 %v3043, %v3042
  %v3099 = vpack.c.b16 %v3045, %v3044
  %v3100 = vpack.c.b16 %v3047, %v3046
  %v3101 = vpack.c.b16 %v3049, %v3048
  %v3102 = vpack.c.b16 %v3051, %v3050
  %v3103 = vpack.c.b16 %v3053, %v3052
  %v3104 = vpack.c.b16 %v3055, %v3054
  %v3105 = vpack.c.b16 %v3057, %v3056
  %v3106 = vpack.c.b16 %v3059, %v3058
  %v3107 = vpack.c.b16 %v3061, %v3060
  %v3108 = vpack.c.b16 %v3063, %v3062
  %v3109 = vpack.c.b16 %v3065, %v3064
  %v3110 = vpack.c.b16 %v3067, %v3066
  %v3111 = vpack.c.b16 %v3069, %v3068
  %v3112 = vpack.c.b16 %v3071, %v3070
  %v3113 = vpack.c.b16 %v3073, %v3072
  %v3114 = vpack.c.b16 %v3075, %v3074
  %v3115 = vpack.c.b16 %v3077, %v3076
  %v3116 = vpack.c.b16 %v3079, %v3078
  %v3117 = vpack.c.b16 %v3081, %v3080
  %v3118 = vpack.c.b16 %v3083, %v3082
  %v3119 = vpack.c.b16 %v3085, %v3084
  %v3120 = vpack.c.b16 %v3087, %v3086
  %v3121 = vpack.c.b16 %v3089, %v3088
  %3154 = vmatprep.subr.bf16.mxu0 0
  %3155 = vmatpush1.bf16.msra.mxu0 %v3090
  %3156 = vmatprep.subr.bf16.mxu0 0
  %3157 = vmatpush1.bf16.msra.mxu0 %v3091
  %3158 = vmatprep.subr.bf16.mxu0 0
  %3159 = vmatpush1.bf16.msra.mxu0 %v3092
  %3160 = vmatprep.subr.bf16.mxu0 0
  %3161 = vmatpush1.bf16.msra.mxu0 %v3093
  %3162 = vmatprep.subr.bf16.mxu0 0
  %3163 = vmatpush1.bf16.msra.mxu0 %v3094
  %3164 = vmatprep.subr.bf16.mxu0 0
  %3165 = vmatpush1.bf16.msra.mxu0 %v3095
  %3166 = vmatprep.subr.bf16.mxu0 0
  %3167 = vmatpush1.bf16.msra.mxu0 %v3096
  %3168 = vmatprep.subr.bf16.mxu0 0
  %3169 = vmatpush1.bf16.msra.mxu0 %v3097
  %3170 = vmatprep.subr.bf16.mxu0 0
  %3171 = vmatpush1.bf16.msra.mxu0 %v3098
  %3172 = vmatprep.subr.bf16.mxu0 0
  %3173 = vmatpush1.bf16.msra.mxu0 %v3099
  %3174 = vmatprep.subr.bf16.mxu0 0
  %3175 = vmatpush1.bf16.msra.mxu0 %v3100
  %3176 = vmatprep.subr.bf16.mxu0 0
  %3177 = vmatpush1.bf16.msra.mxu0 %v3101
  %3178 = vmatprep.subr.bf16.mxu0 0
  %3179 = vmatpush1.bf16.msra.mxu0 %v3102
  %3180 = vmatprep.subr.bf16.mxu0 0
  %3181 = vmatpush1.bf16.msra.mxu0 %v3103
  %3182 = vmatprep.subr.bf16.mxu0 0
  %3183 = vmatpush1.bf16.msra.mxu0 %v3104
  %3184 = vmatprep.subr.bf16.mxu0 0
  %3185 = vmatpush1.bf16.msra.mxu0 %v3105
  %3186 = vmatprep.mubr.bf16.mxu0 %v2860
  %3187 = vmatmul.mubr.bf16.gmra.mrb[0].mxu0 %v2859
  %v3188 = vpop.f32.mrb[0].mxu0
  %v3189 = vadd.f32 %v2960, %v3188
  %v3190 = vpop.f32.mrb[0].mxu0
  %v3191 = vpop.f32.mrb[0].mxu0
  %v3192 = vadd.f32 %v2960, %v3191
  %v3193 = vpop.f32.mrb[0].mxu0
  %3194 = vmatprep.mubr.bf16.mxu0 %v2864
  %3195 = vmatmul.mubr.bf16.gmra.mrb[0].mxu0 %v2863
  %v3196 = vpop.f32.mrb[0].mxu0
  %v3197 = vadd.f32 %v2960, %v3196
  %v3198 = vpop.f32.mrb[0].mxu0
  %v3199 = vpop.f32.mrb[0].mxu0
  %v3200 = vadd.f32 %v2960, %v3199
  %v3201 = vpop.f32.mrb[0].mxu0
  %3202 = vmatprep.mubr.bf16.mxu0 %v2868
  %3203 = vmatmul.mubr.bf16.gmra.mrb[0].mxu0 %v2867
  %v3204 = vpop.f32.mrb[0].mxu0
  %v3205 = vadd.f32 %v2960, %v3204
  %v3206 = vpop.f32.mrb[0].mxu0
  %v3207 = vpop.f32.mrb[0].mxu0
  %v3208 = vadd.f32 %v2960, %v3207
  %v3209 = vpop.f32.mrb[0].mxu0
  %3210 = vmatprep.mubr.bf16.mxu0 %v2872
  %3211 = vmatmul.mubr.bf16.gmra.mrb[0].mxu0 %v2871
  %v3212 = vpop.f32.mrb[0].mxu0
  %v3213 = vadd.f32 %v2960, %v3212
  %v3214 = vpop.f32.mrb[0].mxu0
  %v3215 = vpop.f32.mrb[0].mxu0
  %v3216 = vadd.f32 %v2960, %v3215
  %v3217 = vpop.f32.mrb[0].mxu0
  %3218 = vmatprep.mubr.bf16.mxu0 %v2876
  %3219 = vmatmul.mubr.bf16.gmra.mrb[0].mxu0 %v2875
  %v3220 = vpop.f32.mrb[0].mxu0
  %v3221 = vadd.f32 %v2960, %v3220
  %v3222 = vpop.f32.mrb[0].mxu0
  %v3223 = vpop.f32.mrb[0].mxu0
  %v3224 = vadd.f32 %v2960, %v3223
  %v3225 = vpop.f32.mrb[0].mxu0
  %3226 = vmatprep.mubr.bf16.mxu0 %v2880
  %3227 = vmatmul.mubr.bf16.gmra.mrb[0].mxu0 %v2879
  %v3228 = vpop.f32.mrb[0].mxu0
  %v3229 = vadd.f32 %v2960, %v3228
  %v3230 = vpop.f32.mrb[0].mxu0
  %v3231 = vpop.f32.mrb[0].mxu0
  %v3232 = vadd.f32 %v2960, %v3231
  %v3233 = vpop.f32.mrb[0].mxu0
  %3234 = vmatprep.mubr.bf16.mxu0 %v2884
  %3235 = vmatmul.mubr.bf16.gmra.mrb[0].mxu0 %v2883
  %v3236 = vpop.f32.mrb[0].mxu0
  %v3237 = vadd.f32 %v2960, %v3236
  %v3238 = vpop.f32.mrb[0].mxu0
  %v3239 = vpop.f32.mrb[0].mxu0
  %v3240 = vadd.f32 %v2960, %v3239
  %v3241 = vpop.f32.mrb[0].mxu0
  %3242 = vmatprep.mubr.bf16.mxu0 %v2888
  %3243 = vmatmul.mubr.bf16.gmra.mrb[0].mxu0 %v2887
  %v3244 = vpop.f32.mrb[0].mxu0
  %v3245 = vadd.f32 %v2960, %v3244
  %v3246 = vpop.f32.mrb[0].mxu0
  %v3247 = vpop.f32.mrb[0].mxu0
  %v3248 = vadd.f32 %v2960, %v3247
  %v3249 = vpop.f32.mrb[0].mxu0
  %3250 = vdwg.mxu0
  %3251 = vmatprep.subr.bf16.mxu0 0
  %3252 = vmatpush1.bf16.msra.mxu0 %v3106
  %3253 = vmatprep.subr.bf16.mxu0 0
  %3254 = vmatpush1.bf16.msra.mxu0 %v3107
  %3255 = vmatprep.subr.bf16.mxu0 0
  %3256 = vmatpush1.bf16.msra.mxu0 %v3108
  %3257 = vmatprep.subr.bf16.mxu0 0
  %3258 = vmatpush1.bf16.msra.mxu0 %v3109
  %3259 = vmatprep.subr.bf16.mxu0 0
  %3260 = vmatpush1.bf16.msra.mxu0 %v3110
  %3261 = vmatprep.subr.bf16.mxu0 0
  %3262 = vmatpush1.bf16.msra.mxu0 %v3111
  %3263 = vmatprep.subr.bf16.mxu0 0
  %3264 = vmatpush1.bf16.msra.mxu0 %v3112
  %3265 = vmatprep.subr.bf16.mxu0 0
  %3266 = vmatpush1.bf16.msra.mxu0 %v3113
  %3267 = vmatprep.subr.bf16.mxu0 0
  %3268 = vmatpush1.bf16.msra.mxu0 %v3114
  %3269 = vmatprep.subr.bf16.mxu0 0
  %3270 = vmatpush1.bf16.msra.mxu0 %v3115
  %3271 = vmatprep.subr.bf16.mxu0 0
  %3272 = vmatpush1.bf16.msra.mxu0 %v3116
  %3273 = vmatprep.subr.bf16.mxu0 0
  %3274 = vmatpush1.bf16.msra.mxu0 %v3117
  %3275 = vmatprep.subr.bf16.mxu0 0
  %3276 = vmatpush1.bf16.msra.mxu0 %v3118
  %3277 = vmatprep.subr.bf16.mxu0 0
  %3278 = vmatpush1.bf16.msra.mxu0 %v3119
  %3279 = vmatprep.subr.bf16.mxu0 0
  %3280 = vmatpush1.bf16.msra.mxu0 %v3120
  %3281 = vmatprep.subr.bf16.mxu0 0
  %3282 = vmatpush1.bf16.msra.mxu0 %v3121
  %3283 = vmatprep.mubr.bf16.mxu0 %v2862
  %3284 = vmatmul.mubr.bf16.gmra.mrb[0].mxu0 %v2861
  %v3285 = vpop.f32.mrb[0].mxu0
  %v3286 = vadd.f32 %v3189, %v3285
  %v3287 = vpop.f32.mrb[0].mxu0
  %v3288 = vpop.f32.mrb[0].mxu0
  %v3289 = vadd.f32 %v3192, %v3288
  %v3290 = vpop.f32.mrb[0].mxu0
  %3291 = vmatprep.mubr.bf16.mxu0 %v2866
  %3292 = vmatmul.mubr.bf16.gmra.mrb[0].mxu0 %v2865
  %v3293 = vpop.f32.mrb[0].mxu0
  %v3294 = vadd.f32 %v3197, %v3293
  %v3295 = vpop.f32.mrb[0].mxu0
  %v3296 = vpop.f32.mrb[0].mxu0
  %v3297 = vadd.f32 %v3200, %v3296
  %v3298 = vpop.f32.mrb[0].mxu0
  %3299 = vmatprep.mubr.bf16.mxu0 %v2870
  %3300 = vmatmul.mubr.bf16.gmra.mrb[0].mxu0 %v2869
  %v3301 = vpop.f32.mrb[0].mxu0
  %v3302 = vadd.f32 %v3205, %v3301
  %v3303 = vpop.f32.mrb[0].mxu0
  %v3304 = vpop.f32.mrb[0].mxu0
  %v3305 = vadd.f32 %v3208, %v3304
  %v3306 = vpop.f32.mrb[0].mxu0
  %3307 = vmatprep.mubr.bf16.mxu0 %v2874
  %3308 = vmatmul.mubr.bf16.gmra.mrb[0].mxu0 %v2873
  %v3309 = vpop.f32.mrb[0].mxu0
  %v3310 = vadd.f32 %v3213, %v3309
  %v3311 = vpop.f32.mrb[0].mxu0
  %v3312 = vpop.f32.mrb[0].mxu0
  %v3313 = vadd.f32 %v3216, %v3312
  %v3314 = vpop.f32.mrb[0].mxu0
  %3315 = vmatprep.mubr.bf16.mxu0 %v2878
  %3316 = vmatmul.mubr.bf16.gmra.mrb[0].mxu0 %v2877
  %v3317 = vpop.f32.mrb[0].mxu0
  %v3318 = vadd.f32 %v3221, %v3317
  %v3319 = vpop.f32.mrb[0].mxu0
  %v3320 = vpop.f32.mrb[0].mxu0
  %v3321 = vadd.f32 %v3224, %v3320
  %v3322 = vpop.f32.mrb[0].mxu0
  %3323 = vmatprep.mubr.bf16.mxu0 %v2882
  %3324 = vmatmul.mubr.bf16.gmra.mrb[0].mxu0 %v2881
  %v3325 = vpop.f32.mrb[0].mxu0
  %v3326 = vadd.f32 %v3229, %v3325
  %v3327 = vpop.f32.mrb[0].mxu0
  %v3328 = vpop.f32.mrb[0].mxu0
  %v3329 = vadd.f32 %v3232, %v3328
  %v3330 = vpop.f32.mrb[0].mxu0
  %3331 = vmatprep.mubr.bf16.mxu0 %v2886
  %3332 = vmatmul.mubr.bf16.gmra.mrb[0].mxu0 %v2885
  %v3333 = vpop.f32.mrb[0].mxu0
  %v3334 = vadd.f32 %v3237, %v3333
  %v3335 = vpop.f32.mrb[0].mxu0
  %v3336 = vpop.f32.mrb[0].mxu0
  %v3337 = vadd.f32 %v3240, %v3336
  %v3338 = vpop.f32.mrb[0].mxu0
  %3339 = vmatprep.mubr.bf16.mxu0 %v2890
  %3340 = vmatmul.mubr.bf16.gmra.mrb[0].mxu0 %v2889
  %v3341 = vpop.f32.mrb[0].mxu0
  %v3342 = vadd.f32 %v3245, %v3341
  %v3343 = vpop.f32.mrb[0].mxu0
  %v3344 = vpop.f32.mrb[0].mxu0
  %v3345 = vadd.f32 %v3248, %v3344
  %v3346 = vpop.f32.mrb[0].mxu0
  %3347 = vdwg.mxu0
  %3348 = vst [vmem:[%s5] sm:$0xff] %v3286
  %3349 = vst [vmem:[%s5 + $0x8] sm:$0xff] %v3289
  %3350 = vst [vmem:[%s5 + $0x10] sm:$0xff] %v3294
  %3351 = vst [vmem:[%s5 + $0x18] sm:$0xff] %v3297
  %3352 = vst [vmem:[%s5 + $0x20] sm:$0xff] %v3302
  %3353 = vst [vmem:[%s5 + $0x28] sm:$0xff] %v3305
  %3354 = vst [vmem:[%s5 + $0x30] sm:$0xff] %v3310
  %3355 = vst [vmem:[%s5 + $0x38] sm:$0xff] %v3313
  %3356 = vst [vmem:[%s5 + $0x40] sm:$0xff] %v3318
  %3357 = vst [vmem:[%s5 + $0x48] sm:$0xff] %v3321
  %3358 = vst [vmem:[%s5 + $0x50] sm:$0xff] %v3326
  %3359 = vst [vmem:[%s5 + $0x58] sm:$0xff] %v3329
  %3360 = vst [vmem:[%s5 + $0x60] sm:$0xff] %v3334
  %3361 = vst [vmem:[%s5 + $0x68] sm:$0xff] %v3337
  %3362 = vst [vmem:[%s5 + $0x70] sm:$0xff] %v3342
  %3363 = vst [vmem:[%s5 + $0x78] sm:$0xff] %v3345
  // Predicated region
  $region22: #{label_predictor_forward.1} parent=0 // pred_check
    _
  $region23: #{label_predictor_forward.1} parent=0 // pred_check_branch
    %3365 = sbr.rel (0) target = $region25
  $region24: #{label_predictor_forward.1} parent=0 // pred_region
    _
  $region25: #{label_predictor_forward.1} parent=0 // pred_fallthru
    _
  // Predicated region
  $region26: #{label_predictor_forward.1} parent=0 // pred_check
    _
  $region27: #{label_predictor_forward.1} parent=0 // pred_check_branch
    %3367 = sbr.rel (0) target = $region29
  $region28: #{label_predictor_forward.1} parent=0 // pred_region
    _
  $region29: #{label_predictor_forward.1} parent=0 // pred_fallthru
    _

</llo_original>
